<compile_context>
chip_gen: v7x
topology: tpu7x:2x2x1
jax: 0.10.0
libtpu: 0.0.40
codegen_flags: <defaults>
</compile_context>

<pallas_src>
import math

import jax
import jax.numpy as jnp
import numpy as np
from jax.experimental import pallas as pl
from jax.experimental.pallas import tpu as pltpu


# --------------------------------------------------------------------------
# synthetic `args` global (mirrors what utils.py expects)
# --------------------------------------------------------------------------
class _Args:
    n_pca = 6
    n_cam = 3
    proj_type = "orth"
    fov = 60.0


args = _Args()

# problem sizes (small, consistent with the forward pass)
N = 2                 # batch
C = 4                 # image channels
H = W = 16            # spatial
N_JOINTS = 21         # MANO joints
N_VERTS = 32          # synthetic vertex count
THETA_DIM = 48        # pose_theta size
COEF_DIM = 10 + (args.n_pca + 3) + args.n_cam          # 22
MANO_IN = (args.n_pca + 3) + 10                        # 19
MANO_OUT = 3 * N_VERTS + 3 * N_JOINTS + THETA_DIM      # 207
HEAD_COUT = N_JOINTS + 3 * N_JOINTS + 1                # hms + pofs + masks = 85

# lane-dense padded feature dims (multiples of 128)
COEF_PAD = 128        # holds 2 * COEF_DIM = 44 fused coefficient columns
HEAD_PAD = 128        # holds HEAD_COUT = 85 conv output channels
MANO_PAD = 256        # holds MANO_OUT = 207 decoder columns


# --------------------------------------------------------------------------
# Pallas kernels
# --------------------------------------------------------------------------
def _dense_kernel(x_ref, w_ref, b_ref, o_ref, acc_ref):
    """K-tiled  out = x @ w + b  with an f32 VMEM accumulator."""
    @pl.when(pl.program_id(0) == 0)
    def _():
        acc_ref[...] = jnp.zeros_like(acc_ref)

    acc_ref[...] += jnp.dot(x_ref[...], w_ref[...],
                            preferred_element_type=jnp.float32)

    @pl.when(pl.program_id(0) == pl.num_programs(0) - 1)
    def _():
        o_ref[...] = acc_ref[...] + b_ref[...]


def dense(x, w_pad, b_pad, *, max_tk=1024):
    """(M, K) @ (K, Pp) + b.

    M is padded up to a multiple of 8 sublanes; Pp (weight columns) must
    already be a multiple of 128 lanes (weights are stored zero-padded).
    K is tiled with an accumulator when it grows beyond `max_tk` (v7x VMEM
    safety); at the toy sizes here it is a single block / single grid step.
    """
    M, K = x.shape
    Kw, P = w_pad.shape
    assert K == Kw and P % 128 == 0

    Mp = max(8, -(-M // 8) * 8)
    if Mp != M:
        x = jnp.pad(x, ((0, Mp - M), (0, 0)))

    if K > max_tk and K % max_tk == 0:
        tk = max_tk
    else:
        tk = K
    nk = K // tk

    return pl.pallas_call(
        _dense_kernel,
        out_shape=jax.ShapeDtypeStruct((Mp, P), jnp.float32),
        grid=(nk,),
        in_specs=[
            pl.BlockSpec((Mp, tk), lambda k: (0, k)),
            pl.BlockSpec((tk, P), lambda k: (k, 0)),
            pl.BlockSpec((1, P), lambda k: (0, 0)),
        ],
        out_specs=pl.BlockSpec((Mp, P), lambda k: (0, 0)),
        scratch_shapes=[pltpu.VMEM((Mp, P), jnp.float32)],
        compiler_params=pltpu.CompilerParams(
            dimension_semantics=("arbitrary",)),
    )(x, w_pad, b_pad.reshape(1, P))


def _conv1x1_kernel(x_ref, w_ref, b_ref, o_ref):
    """1x1 conv kept in NCHW: out[n] = W^T (Cout, C) @ x[n] (C, H*W) + b."""
    w = w_ref[...]                      # (Cout_pad, C)
    b = b_ref[...]                      # (Cout_pad, 1) -> broadcasts over H*W
    for n in range(x_ref.shape[0]):     # static unroll over the tiny batch
        o_ref[n] = jnp.dot(w, x_ref[n],
                           preferred_element_type=jnp.float32) + b


def conv1x1_nchw(x_nchw, w_t_pad, b_pad):
    """1x1 conv on an NCHW tensor; single VMEM block, no layout transposes."""
    n, c, h, w = x_nchw.shape
    cout = w_t_pad.shape[0]
    hw = h * w
    x3 = x_nchw.reshape(n, c, hw)       # pure reshape, no data movement
    out = pl.pallas_call(
        _conv1x1_kernel,
        out_shape=jax.ShapeDtypeStruct((n, cout, hw), jnp.float32),
        grid=(1,),
        in_specs=[
            pl.BlockSpec((n, c, hw), lambda i: (0, 0, 0)),
            pl.BlockSpec((cout, c), lambda i: (0, 0)),
            pl.BlockSpec((cout, 1), lambda i: (0, 0)),
        ],
        out_specs=pl.BlockSpec((n, cout, hw), lambda i: (0, 0, 0)),
        compiler_params=pltpu.CompilerParams(
            dimension_semantics=("arbitrary",)),
    )(x3, w_t_pad, b_pad.reshape(cout, 1))
    return out.reshape(n, cout, h, w)


# --------------------------------------------------------------------------
# projection (plain jnp — ~126 floats, a kernel launch would be pure overhead)
# --------------------------------------------------------------------------
def batch_orth_proj(X, camera, keepz=False):
    cam = camera.reshape(-1, 1, 3)
    x, y, z = X[..., 0], X[..., 1], X[..., 2]
    s, tx, ty = cam[..., 0], cam[..., 1], cam[..., 2]
    px, py = s * (tx + x), s * (ty + y)
    xy = (jnp.stack([px, py], -1) + 1.0) / 2.0
    if keepz:
        return jnp.concatenate([xy, (s * z)[..., None]], -1)
    return xy


def batch_pers_proj(X, camera, z_cam=200.0, keepz=False):
    r_fov = args.fov / 180.0 * math.pi
    t_fov = math.tan(r_fov)
    cam = camera.reshape(-1, 1, 3)
    x, y, z = X[..., 0], X[..., 1], X[..., 2]
    tx, ty, tz = cam[..., 0], cam[..., 1], cam[..., 2]
    x, y = tx + x, ty + y
    z = jnp.clip(z_cam + (tz + z), 1e-6, 100.0)
    px, py = x / z / t_fov, y / z / t_fov
    xy = (jnp.stack([px, py], -1) + 1.0) / 2.0
    if keepz:
        return jnp.concatenate([xy, z[..., None]], -1)
    return xy


def batch_proj(X, camera, mode="orth", keepz=False):
    if mode == "orth":
        return batch_orth_proj(X, camera, keepz=keepz)
    return batch_pers_proj(X, camera, keepz=keepz)


# --------------------------------------------------------------------------
# synthetic parameter init (deterministic, stored pre-padded for the kernels)
# --------------------------------------------------------------------------
def init_params(key):
    ks = jax.random.split(key, 8)
    # backbone head (two stages, intermediate-supervision style) -> fused coef
    Wc0 = 0.02 * jax.random.normal(ks[0], (C * H * W, COEF_DIM), jnp.float32)
    Wc1 = 0.02 * jax.random.normal(ks[1], (C * H * W, COEF_DIM), jnp.float32)
    bc = 0.01 * jax.random.normal(ks[2], (2 * COEF_DIM,), jnp.float32)
    # hms / pofs / masks heads as one fused 1x1 conv, stored transposed (Cout, C)
    Wh_t = 0.1 * jax.random.normal(ks[3], (HEAD_COUT, C), jnp.float32)
    bh = 0.01 * jax.random.normal(ks[4], (HEAD_COUT,), jnp.float32)
    # synthetic MANO linear decoder: [pose | shape] -> [verts | joints | theta]
    Wm = 0.1 * jax.random.normal(ks[5], (MANO_IN, MANO_OUT), jnp.float32)
    bm = 0.01 * jax.random.normal(ks[6], (MANO_OUT,), jnp.float32)

    return {
        "Wc": jnp.pad(jnp.concatenate([Wc0, Wc1], axis=1),
                      ((0, 0), (0, COEF_PAD - 2 * COEF_DIM))),
        "bc": jnp.pad(bc, (0, COEF_PAD - 2 * COEF_DIM)),
        "Wh": jnp.pad(Wh_t, ((0, HEAD_PAD - HEAD_COUT), (0, 0))),
        "bh": jnp.pad(bh, (0, HEAD_PAD - HEAD_COUT)),
        "Wm": jnp.pad(Wm, ((0, 0), (0, MANO_PAD - MANO_OUT))),
        "bm": jnp.pad(bm, (0, MANO_PAD - MANO_OUT)),
    }


# --------------------------------------------------------------------------
# Agent forward (mirrors the PyTorch module)
# --------------------------------------------------------------------------
def model_forward(params, img):
    n = img.shape[0]
    x_flat = img.reshape(n, -1)                           # (N, C*H*W) reshape only
    # ONE fused matmul for both coefficient stages
    coef = dense(x_flat, params["Wc"], params["bc"])[:n, : 2 * COEF_DIM]
    coef3ds = [coef[:, :COEF_DIM], coef[:, COEF_DIM:]]
    # ONE fused 1x1-conv for hms + pofs + masks, NCHW end-to-end
    head = conv1x1_nchw(img, params["Wh"], params["bh"])  # (N, HEAD_PAD, H, W)
    hms = head[:, :N_JOINTS]
    pofs = head[:, N_JOINTS: 4 * N_JOINTS]
    masks = head[:, 4 * N_JOINTS: 4 * N_JOINTS + 1]
    return coef3ds, hms, pofs, masks


def mano_decode_batched(params, x_mano, n):
    """Both MANO stages stacked into one (2N, 19) @ (19, 256) kernel call."""
    out = dense(x_mano, params["Wm"], params["bm"])[: 2 * n]
    return out


def agent_forward(params, img):
    n = img.shape[0]
    coef3ds, hms, pofs, masks = model_forward(params, img)

    # split coefficients exactly like the PyTorch Agent
    splits = []
    for coef3d in coef3ds:
        w_shape = coef3d[:, :10].reshape(-1, 10)
        w_pose = coef3d[:, 10: 10 + args.n_pca + 3].reshape(-1, args.n_pca + 3)
        w_st = coef3d[:, 10 + args.n_pca + 3:]
        splits.append((w_shape, w_pose, w_st))

    # batch the two MANO decodes into a single matmul kernel
    x_mano = jnp.concatenate(
        [jnp.concatenate([w_pose, w_shape], axis=1)
         for (w_shape, w_pose, _) in splits],
        axis=0,
    )                                                     # (2N, 19)
    m_out = mano_decode_batched(params, x_mano, n)        # (2N, MANO_PAD)

    mano_outputs, joints_2ds = [], []
    for i, (w_shape, w_pose, w_st) in enumerate(splits):
        o = m_out[i * n: (i + 1) * n]
        verts = o[:, : 3 * N_VERTS].reshape(-1, N_VERTS, 3)
        joints = o[:, 3 * N_VERTS: 3 * N_VERTS + 3 * N_JOINTS].reshape(-1, N_JOINTS, 3)
        theta = o[:, 3 * N_VERTS + 3 * N_JOINTS:
                  3 * N_VERTS + 3 * N_JOINTS + THETA_DIM]
        mano_outputs.append(
            {"thetas": theta, "verts": verts, "betas": w_shape,
             "joints": joints, "w_cam": w_st}
        )
        joints_2ds.append(batch_proj(joints, w_st, args.proj_type))
    return mano_outputs, joints_2ds, hms, pofs, masks


# --------------------------------------------------------------------------
# reference (pure jnp) for correctness check
# --------------------------------------------------------------------------
def reference_forward(params, img):
    n = img.shape[0]
    Wc = params["Wc"][:, : 2 * COEF_DIM]
    bc = params["bc"][: 2 * COEF_DIM]
    x_flat = img.reshape(n, -1)
    coef = x_flat @ Wc + bc
    coef3ds = [coef[:, :COEF_DIM], coef[:, COEF_DIM:]]

    Wh = params["Wh"][:HEAD_COUT]                         # (85, C)
    bh = params["bh"][:HEAD_COUT]
    head = jnp.einsum("oc,nchw->nohw", Wh, img) + bh[None, :, None, None]

    Wm = params["Wm"][:, :MANO_OUT]
    bm = params["bm"][:MANO_OUT]
    outs2d, verts_list = [], []
    for coef3d in coef3ds:
        w_shape = coef3d[:, :10]
        w_pose = coef3d[:, 10:10 + args.n_pca + 3]
        w_st = coef3d[:, 10 + args.n_pca + 3:]
        m = jnp.concatenate([w_pose, w_shape], 1) @ Wm + bm
        verts_list.append(m[:, : 3 * N_VERTS].reshape(-1, N_VERTS, 3))
        joints = m[:, 3 * N_VERTS: 3 * N_VERTS + 3 * N_JOINTS].reshape(-1, N_JOINTS, 3)
        s, tx, ty = w_st[:, 0:1], w_st[:, 1:2], w_st[:, 2:3]
        px = s * (tx + joints[..., 0])
        py = s * (ty + joints[..., 1])
        outs2d.append((jnp.stack([px, py], -1) + 1.0) / 2.0)
    return coef3ds, outs2d, head, verts_list


# --------------------------------------------------------------------------
if __name__ == "__main__":
    key = jax.random.PRNGKey(0)
    kp, kx = jax.random.split(key)
    params = init_params(kp)
    img = jax.random.normal(kx, (N, C, H, W), jnp.float32)   # NCHW, like PyTorch

    fwd = jax.jit(agent_forward)
    mano_outputs, joints_2ds, hms, pofs, masks = fwd(params, img)
    jax.block_until_ready(joints_2ds[0])
    jax.block_until_ready(hms)

    # sanity check vs pure-jnp reference
    ref_coefs, ref_2ds, ref_head, ref_verts = reference_forward(params, img)
    np.testing.assert_allclose(np.asarray(joints_2ds[0]), np.asarray(ref_2ds[0]),
                               rtol=1e-3, atol=1e-3)
    np.testing.assert_allclose(np.asarray(joints_2ds[1]), np.asarray(ref_2ds[1]),
                               rtol=1e-3, atol=1e-3)
    np.testing.assert_allclose(np.asarray(hms),
                               np.asarray(ref_head[:, :N_JOINTS]),
                               rtol=1e-3, atol=1e-3)
    np.testing.assert_allclose(np.asarray(pofs),
                               np.asarray(ref_head[:, N_JOINTS:4 * N_JOINTS]),
                               rtol=1e-3, atol=1e-3)
    np.testing.assert_allclose(np.asarray(masks),
                               np.asarray(ref_head[:, 4 * N_JOINTS:4 * N_JOINTS + 1]),
                               rtol=1e-3, atol=1e-3)
    np.testing.assert_allclose(np.asarray(mano_outputs[0]["verts"]),
                               np.asarray(ref_verts[0]), rtol=1e-3, atol=1e-3)

    assert mano_outputs[0]["verts"].shape == (N, N_VERTS, 3)
    assert mano_outputs[0]["joints"].shape == (N, N_JOINTS, 3)
    assert mano_outputs[0]["thetas"].shape == (N, THETA_DIM)
    assert mano_outputs[0]["betas"].shape == (N, 10)
    assert joints_2ds[0].shape == (N, N_JOINTS, 2)
    assert hms.shape == (N, N_JOINTS, H, W)
    assert pofs.shape == (N, 3 * N_JOINTS, H, W)
    assert masks.shape == (N, 1, H, W)
    print("KERNEL_OK")
</pallas_src>

<mosaic_0001>
module attributes {stable_mosaic.version = 11 : i64} {
  func.func @_dense_kernel(%arg0: i32, %arg1: memref<8x1024xf32, #tpu.memory_space<vmem>>, %arg2: memref<1024x128xf32, #tpu.memory_space<vmem>>, %arg3: memref<1x128xf32, #tpu.memory_space<vmem>>, %arg4: memref<8x128xf32, #tpu.memory_space<vmem>>, %arg5: memref<8x128xf32, #tpu.memory_space<vmem>>) attributes {dimension_semantics = [#tpu.dimension_semantics<arbitrary>], iteration_bounds = array<i64: 1>, scalar_prefetch = 0 : i64, scratch_operands = 1 : i64, tpu.core_type = #tpu.core_type<tc>, window_params = [{transform_indices = @transform_0, window_bounds = array<i64: 8, 1024>}, {transform_indices = @transform_1, window_bounds = array<i64: 1024, 128>}, {pipeline_mode = #tpu.pipeline_mode<synchronous>, transform_indices = @transform_2, window_bounds = array<i64: 1, 128>}, {pipeline_mode = #tpu.pipeline_mode<synchronous>, transform_indices = @transform_3, window_bounds = array<i64: 8, 128>}]} {
    %c0_i32 = arith.constant 0 : i32
    %0 = arith.cmpi eq, %arg0, %c0_i32 : i32
    %1 = arith.extui %0 : i1 to i32
    %c0_i32_0 = arith.constant 0 : i32
    %2 = arith.cmpi ne, %1, %c0_i32_0 : i32
    scf.if %2 {
      %cst_10 = arith.constant 0.000000e+00 : f32
      %12 = vector.broadcast %cst_10 : f32 to vector<8x128xf32>
      %c0_11 = arith.constant 0 : index
      %c0_12 = arith.constant 0 : index
      %13 = vector.load %arg5[%c0_11, %c0_12] : memref<8x128xf32, #tpu.memory_space<vmem>>, vector<8x128xf32>
      tpu.vector_store %arg5[%c0_11, %c0_12], %12 {strides = array<i32>} : memref<8x128xf32, #tpu.memory_space<vmem>>, vector<8x128xf32>,
    } else {
    }
    %c0 = arith.constant 0 : index
    %c0_1 = arith.constant 0 : index
    %3 = vector.load %arg5[%c0, %c0_1] : memref<8x128xf32, #tpu.memory_space<vmem>>, vector<8x128xf32>
    %c0_2 = arith.constant 0 : index
    %c0_3 = arith.constant 0 : index
    %4 = vector.load %arg1[%c0_2, %c0_3] : memref<8x1024xf32, #tpu.memory_space<vmem>>, vector<8x1024xf32>
    %c0_4 = arith.constant 0 : index
    %c0_5 = arith.constant 0 : index
    %5 = vector.load %arg2[%c0_4, %c0_5] : memref<1024x128xf32, #tpu.memory_space<vmem>>, vector<1024x128xf32>
    %cst = arith.constant dense<0.000000e+00> : vector<8x128xf32>
    %6 = tpu.matmul %4, %5, %cst {dimension_numbers = #tpu.dot_dimension_numbers<[1], [0], [0], [1], [0, 0, 1, 1], [], []>} : vector<8x1024xf32>, vector<1024x128xf32>, vector<8x128xf32> -> vector<8x128xf32>
    %7 = arith.addf %3, %6 : vector<8x128xf32>
    %c0_6 = arith.constant 0 : index
    %c0_7 = arith.constant 0 : index
    %8 = vector.load %arg5[%c0_6, %c0_7] : memref<8x128xf32, #tpu.memory_space<vmem>>, vector<8x128xf32>
    tpu.vector_store %arg5[%c0_6, %c0_7], %7 {strides = array<i32>} : memref<8x128xf32, #tpu.memory_space<vmem>>, vector<8x128xf32>,
    %c0_i32_8 = arith.constant 0 : i32
    %9 = arith.cmpi eq, %arg0, %c0_i32_8 : i32
    %10 = arith.extui %9 : i1 to i32
    %c0_i32_9 = arith.constant 0 : i32
    %11 = arith.cmpi ne, %10, %c0_i32_9 : i32
    scf.if %11 {
      %c0_10 = arith.constant 0 : index
      %c0_11 = arith.constant 0 : index
      %12 = vector.load %arg5[%c0_10, %c0_11] : memref<8x128xf32, #tpu.memory_space<vmem>>, vector<8x128xf32>
      %c0_12 = arith.constant 0 : index
      %c0_13 = arith.constant 0 : index
      %13 = vector.load %arg3[%c0_12, %c0_13] : memref<1x128xf32, #tpu.memory_space<vmem>>, vector<1x128xf32>
      %14 = vector.broadcast %13 : vector<1x128xf32> to vector<8x128xf32>
      %15 = arith.addf %12, %14 : vector<8x128xf32>
      %c0_14 = arith.constant 0 : index
      %c0_15 = arith.constant 0 : index
      %16 = vector.load %arg4[%c0_14, %c0_15] : memref<8x128xf32, #tpu.memory_space<vmem>>, vector<8x128xf32>
      tpu.vector_store %arg4[%c0_14, %c0_15], %15 {strides = array<i32>} : memref<8x128xf32, #tpu.memory_space<vmem>>, vector<8x128xf32>,
    } else {
    }
    return
  }
  func.func @transform_0(%arg0: i32) -> (i32, i32) {
    %c0_i32 = arith.constant 0 : i32
    %c0_i32_0 = arith.constant 0 : i32
    return %c0_i32, %arg0 : i32, i32
  }
  func.func @transform_1(%arg0: i32) -> (i32, i32) {
    %c0_i32 = arith.constant 0 : i32
    %c0_i32_0 = arith.constant 0 : i32
    return %arg0, %c0_i32 : i32, i32
  }
  func.func @transform_2(%arg0: i32) -> (i32, i32) {
    %c0_i32 = arith.constant 0 : i32
    %c0_i32_0 = arith.constant 0 : i32
    %c0_i32_1 = arith.constant 0 : i32
    return %c0_i32, %c0_i32_0 : i32, i32
  }
  func.func @transform_3(%arg0: i32) -> (i32, i32) {
    %c0_i32 = arith.constant 0 : i32
    %c0_i32_0 = arith.constant 0 : i32
    %c0_i32_1 = arith.constant 0 : i32
    return %c0_i32, %c0_i32_0 : i32, i32
  }
}

module attributes {stable_mosaic.version = 11 : i64} {
  func.func @_dense_kernel(%arg0: i32, %arg1: memref<8x19xf32, #tpu.memory_space<vmem>>, %arg2: memref<19x256xf32, #tpu.memory_space<vmem>>, %arg3: memref<1x256xf32, #tpu.memory_space<vmem>>, %arg4: memref<8x256xf32, #tpu.memory_space<vmem>>, %arg5: memref<8x256xf32, #tpu.memory_space<vmem>>) attributes {dimension_semantics = [#tpu.dimension_semantics<arbitrary>], iteration_bounds = array<i64: 1>, scalar_prefetch = 0 : i64, scratch_operands = 1 : i64, tpu.core_type = #tpu.core_type<tc>, window_params = [{transform_indices = @transform_0, window_bounds = array<i64: 8, 19>}, {transform_indices = @transform_1, window_bounds = array<i64: 19, 256>}, {pipeline_mode = #tpu.pipeline_mode<synchronous>, transform_indices = @transform_2, window_bounds = array<i64: 1, 256>}, {pipeline_mode = #tpu.pipeline_mode<synchronous>, transform_indices = @transform_3, window_bounds = array<i64: 8, 256>}]} {
    %c0_i32 = arith.constant 0 : i32
    %0 = arith.cmpi eq, %arg0, %c0_i32 : i32
    %1 = arith.extui %0 : i1 to i32
    %c0_i32_0 = arith.constant 0 : i32
    %2 = arith.cmpi ne, %1, %c0_i32_0 : i32
    scf.if %2 {
      %cst_10 = arith.constant 0.000000e+00 : f32
      %12 = vector.broadcast %cst_10 : f32 to vector<8x256xf32>
      %c0_11 = arith.constant 0 : index
      %c0_12 = arith.constant 0 : index
      %13 = vector.load %arg5[%c0_11, %c0_12] : memref<8x256xf32, #tpu.memory_space<vmem>>, vector<8x256xf32>
      tpu.vector_store %arg5[%c0_11, %c0_12], %12 {strides = array<i32>} : memref<8x256xf32, #tpu.memory_space<vmem>>, vector<8x256xf32>,
    } else {
    }
    %c0 = arith.constant 0 : index
    %c0_1 = arith.constant 0 : index
    %3 = vector.load %arg5[%c0, %c0_1] : memref<8x256xf32, #tpu.memory_space<vmem>>, vector<8x256xf32>
    %c0_2 = arith.constant 0 : index
    %c0_3 = arith.constant 0 : index
    %4 = vector.load %arg1[%c0_2, %c0_3] : memref<8x19xf32, #tpu.memory_space<vmem>>, vector<8x19xf32>
    %c0_4 = arith.constant 0 : index
    %c0_5 = arith.constant 0 : index
    %5 = vector.load %arg2[%c0_4, %c0_5] : memref<19x256xf32, #tpu.memory_space<vmem>>, vector<19x256xf32>
    %cst = arith.constant dense<0.000000e+00> : vector<8x256xf32>
    %6 = tpu.matmul %4, %5, %cst {dimension_numbers = #tpu.dot_dimension_numbers<[1], [0], [0], [1], [0, 0, 1, 1], [], []>} : vector<8x19xf32>, vector<19x256xf32>, vector<8x256xf32> -> vector<8x256xf32>
    %7 = arith.addf %3, %6 : vector<8x256xf32>
    %c0_6 = arith.constant 0 : index
    %c0_7 = arith.constant 0 : index
    %8 = vector.load %arg5[%c0_6, %c0_7] : memref<8x256xf32, #tpu.memory_space<vmem>>, vector<8x256xf32>
    tpu.vector_store %arg5[%c0_6, %c0_7], %7 {strides = array<i32>} : memref<8x256xf32, #tpu.memory_space<vmem>>, vector<8x256xf32>,
    %c0_i32_8 = arith.constant 0 : i32
    %9 = arith.cmpi eq, %arg0, %c0_i32_8 : i32
    %10 = arith.extui %9 : i1 to i32
    %c0_i32_9 = arith.constant 0 : i32
    %11 = arith.cmpi ne, %10, %c0_i32_9 : i32
    scf.if %11 {
      %c0_10 = arith.constant 0 : index
      %c0_11 = arith.constant 0 : index
      %12 = vector.load %arg5[%c0_10, %c0_11] : memref<8x256xf32, #tpu.memory_space<vmem>>, vector<8x256xf32>
      %c0_12 = arith.constant 0 : index
      %c0_13 = arith.constant 0 : index
      %13 = vector.load %arg3[%c0_12, %c0_13] : memref<1x256xf32, #tpu.memory_space<vmem>>, vector<1x256xf32>
      %14 = vector.broadcast %13 : vector<1x256xf32> to vector<8x256xf32>
      %15 = arith.addf %12, %14 : vector<8x256xf32>
      %c0_14 = arith.constant 0 : index
      %c0_15 = arith.constant 0 : index
      %16 = vector.load %arg4[%c0_14, %c0_15] : memref<8x256xf32, #tpu.memory_space<vmem>>, vector<8x256xf32>
      tpu.vector_store %arg4[%c0_14, %c0_15], %15 {strides = array<i32>} : memref<8x256xf32, #tpu.memory_space<vmem>>, vector<8x256xf32>,
    } else {
    }
    return
  }
  func.func @transform_0(%arg0: i32) -> (i32, i32) {
    %c0_i32 = arith.constant 0 : i32
    %c0_i32_0 = arith.constant 0 : i32
    return %c0_i32, %arg0 : i32, i32
  }
  func.func @transform_1(%arg0: i32) -> (i32, i32) {
    %c0_i32 = arith.constant 0 : i32
    %c0_i32_0 = arith.constant 0 : i32
    return %arg0, %c0_i32 : i32, i32
  }
  func.func @transform_2(%arg0: i32) -> (i32, i32) {
    %c0_i32 = arith.constant 0 : i32
    %c0_i32_0 = arith.constant 0 : i32
    %c0_i32_1 = arith.constant 0 : i32
    return %c0_i32, %c0_i32_0 : i32, i32
  }
  func.func @transform_3(%arg0: i32) -> (i32, i32) {
    %c0_i32 = arith.constant 0 : i32
    %c0_i32_0 = arith.constant 0 : i32
    %c0_i32_1 = arith.constant 0 : i32
    return %c0_i32, %c0_i32_0 : i32, i32
  }
}

module attributes {stable_mosaic.version = 11 : i64} {
  func.func @_conv1x1_kernel(%arg0: i32, %arg1: memref<2x4x256xf32, #tpu.memory_space<vmem>>, %arg2: memref<128x4xf32, #tpu.memory_space<vmem>>, %arg3: memref<128x1xf32, #tpu.memory_space<vmem>>, %arg4: memref<2x128x256xf32, #tpu.memory_space<vmem>>) attributes {dimension_semantics = [#tpu.dimension_semantics<arbitrary>], iteration_bounds = array<i64: 1>, scalar_prefetch = 0 : i64, scratch_operands = 0 : i64, tpu.core_type = #tpu.core_type<tc>, window_params = [{pipeline_mode = #tpu.pipeline_mode<synchronous>, transform_indices = @transform_0, window_bounds = array<i64: 2, 4, 256>}, {pipeline_mode = #tpu.pipeline_mode<synchronous>, transform_indices = @transform_1, window_bounds = array<i64: 128, 4>}, {pipeline_mode = #tpu.pipeline_mode<synchronous>, transform_indices = @transform_2, window_bounds = array<i64: 128, 1>}, {pipeline_mode = #tpu.pipeline_mode<synchronous>, transform_indices = @transform_3, window_bounds = array<i64: 2, 128, 256>}]} {
    %c0 = arith.constant 0 : index
    %c0_0 = arith.constant 0 : index
    %0 = vector.load %arg2[%c0, %c0_0] : memref<128x4xf32, #tpu.memory_space<vmem>>, vector<128x4xf32>
    %c0_1 = arith.constant 0 : index
    %c0_2 = arith.constant 0 : index
    %1 = vector.load %arg3[%c0_1, %c0_2] : memref<128x1xf32, #tpu.memory_space<vmem>>, vector<128x1xf32>
    %c0_3 = arith.constant 0 : index
    %c0_4 = arith.constant 0 : index
    %c0_5 = arith.constant 0 : index
    %2 = vector.load %arg1[%c0_3, %c0_4, %c0_5] : memref<2x4x256xf32, #tpu.memory_space<vmem>>, vector<1x4x256xf32>
    %3 = vector.shape_cast %2 : vector<1x4x256xf32> to vector<4x256xf32>
    %cst = arith.constant dense<0.000000e+00> : vector<128x256xf32>
    %4 = tpu.matmul %0, %3, %cst {dimension_numbers = #tpu.dot_dimension_numbers<[1], [0], [0], [1], [0, 0, 1, 1], [], []>} : vector<128x4xf32>, vector<4x256xf32>, vector<128x256xf32> -> vector<128x256xf32>
    %5 = vector.broadcast %1 : vector<128x1xf32> to vector<128x256xf32>
    %6 = arith.addf %4, %5 : vector<128x256xf32>
    %c0_6 = arith.constant 0 : index
    %c0_7 = arith.constant 0 : index
    %c0_8 = arith.constant 0 : index
    %7 = vector.load %arg4[%c0_6, %c0_7, %c0_8] : memref<2x128x256xf32, #tpu.memory_space<vmem>>, vector<1x128x256xf32>
    %8 = vector.shape_cast %7 : vector<1x128x256xf32> to vector<128x256xf32>
    %9 = vector.shape_cast %6 : vector<128x256xf32> to vector<1x128x256xf32>
    tpu.vector_store %arg4[%c0_6, %c0_7, %c0_8], %9 {strides = array<i32>} : memref<2x128x256xf32, #tpu.memory_space<vmem>>, vector<1x128x256xf32>,
    %c1 = arith.constant 1 : index
    %c0_9 = arith.constant 0 : index
    %c0_10 = arith.constant 0 : index
    %10 = vector.load %arg1[%c1, %c0_9, %c0_10] : memref<2x4x256xf32, #tpu.memory_space<vmem>>, vector<1x4x256xf32>
    %11 = vector.shape_cast %10 : vector<1x4x256xf32> to vector<4x256xf32>
    %cst_11 = arith.constant dense<0.000000e+00> : vector<128x256xf32>
    %12 = tpu.matmul %0, %11, %cst_11 {dimension_numbers = #tpu.dot_dimension_numbers<[1], [0], [0], [1], [0, 0, 1, 1], [], []>} : vector<128x4xf32>, vector<4x256xf32>, vector<128x256xf32> -> vector<128x256xf32>
    %13 = vector.broadcast %1 : vector<128x1xf32> to vector<128x256xf32>
    %14 = arith.addf %12, %13 : vector<128x256xf32>
    %c1_12 = arith.constant 1 : index
    %c0_13 = arith.constant 0 : index
    %c0_14 = arith.constant 0 : index
    %15 = vector.load %arg4[%c1_12, %c0_13, %c0_14] : memref<2x128x256xf32, #tpu.memory_space<vmem>>, vector<1x128x256xf32>
    %16 = vector.shape_cast %15 : vector<1x128x256xf32> to vector<128x256xf32>
    %17 = vector.shape_cast %14 : vector<128x256xf32> to vector<1x128x256xf32>
    tpu.vector_store %arg4[%c1_12, %c0_13, %c0_14], %17 {strides = array<i32>} : memref<2x128x256xf32, #tpu.memory_space<vmem>>, vector<1x128x256xf32>,
    return
  }
  func.func @transform_0(%arg0: i32) -> (i32, i32, i32) {
    %c0_i32 = arith.constant 0 : i32
    %c0_i32_0 = arith.constant 0 : i32
    %c0_i32_1 = arith.constant 0 : i32
    %c0_i32_2 = arith.constant 0 : i32
    return %c0_i32, %c0_i32_0, %c0_i32_1 : i32, i32, i32
  }
  func.func @transform_1(%arg0: i32) -> (i32, i32) {
    %c0_i32 = arith.constant 0 : i32
    %c0_i32_0 = arith.constant 0 : i32
    %c0_i32_1 = arith.constant 0 : i32
    return %c0_i32, %c0_i32_0 : i32, i32
  }
  func.func @transform_2(%arg0: i32) -> (i32, i32) {
    %c0_i32 = arith.constant 0 : i32
    %c0_i32_0 = arith.constant 0 : i32
    %c0_i32_1 = arith.constant 0 : i32
    return %c0_i32, %c0_i32_0 : i32, i32
  }
  func.func @transform_3(%arg0: i32) -> (i32, i32, i32) {
    %c0_i32 = arith.constant 0 : i32
    %c0_i32_0 = arith.constant 0 : i32
    %c0_i32_1 = arith.constant 0 : i32
    %c0_i32_2 = arith.constant 0 : i32
    return %c0_i32, %c0_i32_0, %c0_i32_1 : i32, i32, i32
  }
}

</mosaic_0001>

<llo_original>
// kernel: agent_forward.5
$region0: #{agent_forward.5}
  #allocation0 [shape = 'u32[]', space=smem, size = 0x4, offset = 0x4, fixed_abs, tag = 'smem constant byte address 0x4 - core index']
  #allocation1 [shape = 'u32[144,128]{1,0:T(1,128)}', space=vmem, size = 0x12000, scoped, tag = 'internal scratch']
  #allocation2 [shape = 'f32[8,256]{1,0:T(8,128)}', space=vmem, size = 0x2000, scoped, tag = 'scratch operand']
  %s0 = inlined_call_operand.vmem [shape: f32[8,19], index: 0, kind: input, shape index: {}]
  %s1 = inlined_call_operand.vmem [shape: f32[19,256], index: 1, kind: input, shape index: {}]
  %s2 = inlined_call_operand.vmem [shape: f32[1,256], index: 2, kind: input, shape index: {}]
  %s3 = inlined_call_operand.vmem [shape: f32[8,256], index: 3, kind: output, shape index: {}]
  %s4 = sld [smem:[#allocation0]]
  $region30: #{agent_forward.5} parent=0
    _
  %s6 = ssub.s32 1, %s4
  %s7 = scalar_select 0, %s6, %s4
  // Predicated region
  $region2: #{agent_forward.5} parent=0 // pred_check
    _
  $region3: #{agent_forward.5} parent=0 // pred_check_branch
    %9 = sbr.rel (0) target = $region5
  $region4: #{agent_forward.5} parent=0 // pred_region
    _
  $region5: #{agent_forward.5} parent=0 // pred_fallthru
    _
  // Predicated region
  $region6: #{agent_forward.5} parent=0 // pred_check
    _
  $region7: #{agent_forward.5} parent=0 // pred_check_branch
    %11 = sbr.rel (0) target = $region9
  $region8: #{agent_forward.5} parent=0 // pred_region
    _
  $region9: #{agent_forward.5} parent=0 // pred_fallthru
    _
  // Predicated region
  $region10: #{agent_forward.5} parent=0 // pred_check
    _
  $region11: #{agent_forward.5} parent=0 // pred_check_branch
    %13 = sbr.rel (0) target = $region13
  $region12: #{agent_forward.5} parent=0 // pred_region
    _
  $region13: #{agent_forward.5} parent=0 // pred_fallthru
    _
  %p14 = scmp.eq.s32.totalorder 0, 0
  // Predicated region
  $region14: #{agent_forward.5} parent=0 // pred_check
    %p15 = pneg %p14
  $region15: #{agent_forward.5} parent=0 // pred_check_branch
    %17 = sbr.rel (%p15) target = $region17
  $region16: #{agent_forward.5} parent=0 // pred_region
    %18 = vst [vmem:[#allocation2] sm:$0xff] 0.0
    %19 = vst [vmem:[#allocation2 + $0x8] sm:$0xff] 0.0
  $region17: #{agent_forward.5} parent=0 // pred_fallthru
    _
  %v20 = vld [vmem:[#allocation2] sm:$0xff]
  %v21 = vld [vmem:[#allocation2 + $0x8] sm:$0xff]
  %v22 = vld [vmem:[%s0] sm:$0xff]
  %v23 = vld [vmem:[%s1] sm:$0xff]
  %v24 = vld [vmem:[%s1 + $0x8] sm:$0xff]
  %v25 = vld [vmem:[%s1 + $0x10] sm:$0xff]
  %v26 = vld [vmem:[%s1 + $0x18] sm:$0xff]
  %v27 = vld [vmem:[%s1 + $0x20] sm:$0x7]
  %v28 = vld [vmem:[%s1 + $0x28] sm:$0x7]
  %vm29 = vcmask 154624
  %v31 = vsel %vm29, %v22, 0
  %vm33 = vcmask 1042432
  %v35 = vsel %vm33, %v27, 0
  %v38 = vsel %vm33, %v28, 0
  %40 = vmatprep.subr.mxu0 %v24
  %41 = vmatpush1.msra.mxu0 %v23
  %42 = vmatprep.subr.mxu0 %v26
  %43 = vmatpush1.msra.mxu0 %v25
  %44 = vmatprep.subr.mxu0 %v38
  %45 = vmatpush1.msra.mxu0 %v35
  %46 = vmatprep.subr.mxu0 0.0
  %47 = vmatpush1.msra.mxu0 0.0
  %48 = vmatprep.subr.mxu0 0.0
  %49 = vmatpush1.msra.mxu0 0.0
  %50 = vmatprep.subr.mxu0 0.0
  %51 = vmatpush1.msra.mxu0 0.0
  %52 = vmatprep.subr.mxu0 0.0
  %53 = vmatpush1.msra.mxu0 0.0
  %54 = vmatprep.subr.mxu0 0.0
  %55 = vmatpush1.msra.mxu0 0.0
  %56 = vmatprep.subr.mxu0 0.0
  %57 = vmatpush1.msra.mxu0 0.0
  %58 = vmatprep.subr.mxu0 0.0
  %59 = vmatpush1.msra.mxu0 0.0
  %60 = vmatprep.subr.mxu0 0.0
  %61 = vmatpush1.msra.mxu0 0.0
  %62 = vmatprep.subr.mxu0 0.0
  %63 = vmatpush1.msra.mxu0 0.0
  %64 = vmatprep.subr.mxu0 0.0
  %65 = vmatpush1.msra.mxu0 0.0
  %66 = vmatprep.subr.mxu0 0.0
  %67 = vmatpush1.msra.mxu0 0.0
  %68 = vmatprep.subr.mxu0 0.0
  %69 = vmatpush1.msra.mxu0 0.0
  %70 = vmatprep.subr.mxu0 0.0
  %71 = vmatpush1.msra.mxu0 0.0
  %72 = vmatprep.subr.mxu0 0.0
  %73 = vmatpush1.msra.mxu0 0.0
  %74 = vmatprep.subr.mxu0 0.0
  %75 = vmatpush1.msra.mxu0 0.0
  %76 = vmatprep.subr.mxu0 0.0
  %77 = vmatpush1.msra.mxu0 0.0
  %78 = vmatprep.subr.mxu0 0.0
  %79 = vmatpush1.msra.mxu0 0.0
  %80 = vmatprep.subr.mxu0 0.0
  %81 = vmatpush1.msra.mxu0 0.0
  %82 = vmatprep.subr.mxu0 0.0
  %83 = vmatpush1.msra.mxu0 0.0
  %84 = vmatprep.subr.mxu0 0.0
  %85 = vmatpush1.msra.mxu0 0.0
  %86 = vmatprep.subr.mxu0 0.0
  %87 = vmatpush1.msra.mxu0 0.0
  %88 = vmatprep.subr.mxu0 0.0
  %89 = vmatpush1.msra.mxu0 0.0
  %90 = vmatprep.subr.mxu0 0.0
  %91 = vmatpush1.msra.mxu0 0.0
  %92 = vmatprep.subr.mxu0 0.0
  %93 = vmatpush1.msra.mxu0 0.0
  %94 = vmatprep.subr.mxu0 0.0
  %95 = vmatpush1.msra.mxu0 0.0
  %96 = vmatprep.subr.mxu0 0.0
  %97 = vmatpush1.msra.mxu0 0.0
  %98 = vmatprep.subr.mxu0 0.0
  %99 = vmatpush1.msra.mxu0 0.0
  %100 = vmatprep.subr.mxu0 0.0
  %101 = vmatpush1.msra.mxu0 0.0
  %102 = vmatprep.subr.mxu0 0.0
  %103 = vmatpush1.msra.mxu0 0.0
  %104 = vmatprep.mubr.f32.mxu0 0.0
  %105 = vmatmul.mubr.f32.gmra.mrb[0].mxu0 %v31
  %v106 = vpop.f32.mrb[0].mxu0
  %v107 = vadd.f32 0.0, %v106
  %v108 = vpop.f32.mrb[0].mxu0
  %v109 = vadd.f32 0.0, %v108
  %110 = vdwg.mxu0
  %v111 = vadd.f32 %v20, %v107
  %v112 = vadd.f32 %v21, %v109
  %113 = vst [vmem:[#allocation2] sm:$0xff] %v111
  %114 = vst [vmem:[#allocation2 + $0x8] sm:$0xff] %v112
  // Predicated region
  $region18: #{agent_forward.5} parent=0 // pred_check
    %p115 = pneg %p14
  $region19: #{agent_forward.5} parent=0 // pred_check_branch
    %117 = sbr.rel (%p115) target = $region21
  $region20: #{agent_forward.5} parent=0 // pred_region
    %v118 = vld [vmem:[#allocation2] sm:$0xff]
    %v119 = vld [vmem:[#allocation2 + $0x8] sm:$0xff]
    %v120 = vld [vmem:[%s2] sm:$0x3]
    %v122 = vlaneseq
    %v123 = vshrl.u32 %v122, 7
    %v124 = vsub.s32 0, %v123
    %v125 = vrot.slane %v120, %v124
    %v126 = vlaneseq
    %v127 = vshrl.u32 %v126, 7
    %v128 = vsub.s32 1, %v127
    %v129 = vrot.slane %v120, %v128
    %v132 = vadd.f32 %v118, %v125
    %v133 = vadd.f32 %v119, %v129
    %134 = vst [vmem:[%s3] sm:$0xff] %v132
    %135 = vst [vmem:[%s3 + $0x8] sm:$0xff] %v133
  $region21: #{agent_forward.5} parent=0 // pred_fallthru
    _
  // Predicated region
  $region22: #{agent_forward.5} parent=0 // pred_check
    _
  $region23: #{agent_forward.5} parent=0 // pred_check_branch
    %137 = sbr.rel (0) target = $region25
  $region24: #{agent_forward.5} parent=0 // pred_region
    _
  $region25: #{agent_forward.5} parent=0 // pred_fallthru
    _
  // Predicated region
  $region26: #{agent_forward.5} parent=0 // pred_check
    _
  $region27: #{agent_forward.5} parent=0 // pred_check_branch
    %139 = sbr.rel (0) target = $region29
  $region28: #{agent_forward.5} parent=0 // pred_region
    _
  $region29: #{agent_forward.5} parent=0 // pred_fallthru
    _

// kernel: agent_forward.3
$region0: #{agent_forward.3}
  #allocation0 [shape = 'u32[]', space=smem, size = 0x4, offset = 0x4, fixed_abs, tag = 'smem constant byte address 0x4 - core index']
  #allocation1 [shape = 'u32[144,128]{1,0:T(1,128)}', space=vmem, size = 0x12000, scoped, tag = 'internal scratch']
  #allocation2 [shape = 'f32[8,128]{1,0:T(8,128)}', space=vmem, size = 0x1000, scoped, tag = 'scratch operand']
  %s0 = inlined_call_operand.vmem [shape: f32[8,1024], index: 0, kind: input, shape index: {}]
  %s1 = inlined_call_operand.hbm [shape: f32[1024,128], index: 1, kind: input, shape index: {}]
  %s2 = inlined_call_operand.vmem [shape: f32[1,128], index: 2, kind: input, shape index: {}]
  %s3 = inlined_call_operand.vmem [shape: f32[8,128], index: 3, kind: output, shape index: {}]
  %s4 = sld [smem:[#allocation0]]
  $region34: #{agent_forward.3} parent=0
    _
  %s6 = ssub.s32 1, %s4
  %s7 = scalar_select 0, %s6, %s4
  $region1: #{agent_forward.3} parent=0
    #allocation3 [shape = 'u8[524288]{0}', space=vmem, size = 0x80000, scoped, tag = 'input window, operand 1, single buffered']
    #allocation4 [shape = 's32[1]{0}', space=sflag, size = 0x4, scoped, tag = 'scoped memory for agent_forward.3']
    %8 = vsyncpa [#allocation4], 0
    // Predicated region
    $region2: #{agent_forward.3} parent=1 // pred_check
      _
    $region3: #{agent_forward.3} parent=1 // pred_check_branch
      %10 = sbr.rel (0) target = $region5
    $region4: #{agent_forward.3} parent=1 // pred_region
      _
    $region5: #{agent_forward.3} parent=1 // pred_fallthru
      _
    // Predicated region
    $region6: #{agent_forward.3} parent=1 // pred_check
      _
    $region7: #{agent_forward.3} parent=1 // pred_check_branch
      %12 = sbr.rel (0) target = $region9
    $region8: #{agent_forward.3} parent=1 // pred_region
      %s14 = ssub.s32 16384, 16384
      %15 = vsyncadd [#allocation4], %s14
      %s16 = sshll.u32 [#allocation3], 4
      %s17 = int_to_ptr.vmem [resolvable:$true] %s16
      %22 = dma.hbm_to_vmem [thread:$0]  %s1, 16384, %s17, [#allocation4], 128, 128, 8
    $region9: #{agent_forward.3} parent=1 // pred_fallthru
      _
    // Predicated region
    $region10: #{agent_forward.3} parent=1 // pred_check
      _
    $region11: #{agent_forward.3} parent=1 // pred_check_branch
      %24 = sbr.rel (0) target = $region13
    $region12: #{agent_forward.3} parent=1 // pred_region
      _
    $region13: #{agent_forward.3} parent=1 // pred_fallthru
      _
    // Predicated region
    $region14: #{agent_forward.3} parent=1 // pred_check
      _
    $region15: #{agent_forward.3} parent=1 // pred_check_branch
      %26 = sbr.rel (0) target = $region17
    $region16: #{agent_forward.3} parent=1 // pred_region
      %27 = dma.done [#allocation4], 16384
    $region17: #{agent_forward.3} parent=1 // pred_fallthru
      _
    %p28 = scmp.eq.s32.totalorder 0, 0
    // Predicated region
    $region18: #{agent_forward.3} parent=1 // pred_check
      %p29 = pneg %p28
    $region19: #{agent_forward.3} parent=1 // pred_check_branch
      %31 = sbr.rel (%p29) target = $region21
    $region20: #{agent_forward.3} parent=1 // pred_region
      %32 = vst [vmem:[#allocation2] sm:$0xff] 0.0
    $region21: #{agent_forward.3} parent=1 // pred_fallthru
      _
    %v33 = vld [vmem:[#allocation2] sm:$0xff]
    %v34 = vld [vmem:[%s0] sm:$0xff]
    %v35 = vld [vmem:[%s0 + $0x8] sm:$0xff]
    %v36 = vld [vmem:[%s0 + $0x10] sm:$0xff]
    %v37 = vld [vmem:[%s0 + $0x18] sm:$0xff]
    %v38 = vld [vmem:[%s0 + $0x20] sm:$0xff]
    %v39 = vld [vmem:[%s0 + $0x28] sm:$0xff]
    %v40 = vld [vmem:[%s0 + $0x30] sm:$0xff]
    %v41 = vld [vmem:[%s0 + $0x38] sm:$0xff]
    %v42 = vld [vmem:[#allocation3] sm:$0xff]
    %v43 = vld [vmem:[#allocation3 + $0x8] sm:$0xff]
    %v44 = vld [vmem:[#allocation3 + $0x10] sm:$0xff]
    %v45 = vld [vmem:[#allocation3 + $0x18] sm:$0xff]
    %v46 = vld [vmem:[#allocation3 + $0x20] sm:$0xff]
    %v47 = vld [vmem:[#allocation3 + $0x28] sm:$0xff]
    %v48 = vld [vmem:[#allocation3 + $0x30] sm:$0xff]
    %v49 = vld [vmem:[#allocation3 + $0x38] sm:$0xff]
    %v50 = vld [vmem:[#allocation3 + $0x40] sm:$0xff]
    %v51 = vld [vmem:[#allocation3 + $0x48] sm:$0xff]
    %v52 = vld [vmem:[#allocation3 + $0x50] sm:$0xff]
    %v53 = vld [vmem:[#allocation3 + $0x58] sm:$0xff]
    %v54 = vld [vmem:[#allocation3 + $0x60] sm:$0xff]
    %v55 = vld [vmem:[#allocation3 + $0x68] sm:$0xff]
    %v56 = vld [vmem:[#allocation3 + $0x70] sm:$0xff]
    %v57 = vld [vmem:[#allocation3 + $0x78] sm:$0xff]
    %v58 = vld [vmem:[#allocation3 + $0x80] sm:$0xff]
    %v59 = vld [vmem:[#allocation3 + $0x88] sm:$0xff]
    %v60 = vld [vmem:[#allocation3 + $0x90] sm:$0xff]
    %v61 = vld [vmem:[#allocation3 + $0x98] sm:$0xff]
    %v62 = vld [vmem:[#allocation3 + $0xa0] sm:$0xff]
    %v63 = vld [vmem:[#allocation3 + $0xa8] sm:$0xff]
    %v64 = vld [vmem:[#allocation3 + $0xb0] sm:$0xff]
    %v65 = vld [vmem:[#allocation3 + $0xb8] sm:$0xff]
    %v66 = vld [vmem:[#allocation3 + $0xc0] sm:$0xff]
    %v67 = vld [vmem:[#allocation3 + $0xc8] sm:$0xff]
    %v68 = vld [vmem:[#allocation3 + $0xd0] sm:$0xff]
    %v69 = vld [vmem:[#allocation3 + $0xd8] sm:$0xff]
    %v70 = vld [vmem:[#allocation3 + $0xe0] sm:$0xff]
    %v71 = vld [vmem:[#allocation3 + $0xe8] sm:$0xff]
    %v72 = vld [vmem:[#allocation3 + $0xf0] sm:$0xff]
    %v73 = vld [vmem:[#allocation3 + $0xf8] sm:$0xff]
    %v74 = vld [vmem:[#allocation3 + $0x100] sm:$0xff]
    %v75 = vld [vmem:[#allocation3 + $0x108] sm:$0xff]
    %v76 = vld [vmem:[#allocation3 + $0x110] sm:$0xff]
    %v77 = vld [vmem:[#allocation3 + $0x118] sm:$0xff]
    %v78 = vld [vmem:[#allocation3 + $0x120] sm:$0xff]
    %v79 = vld [vmem:[#allocation3 + $0x128] sm:$0xff]
    %v80 = vld [vmem:[#allocation3 + $0x130] sm:$0xff]
    %v81 = vld [vmem:[#allocation3 + $0x138] sm:$0xff]
    %v82 = vld [vmem:[#allocation3 + $0x140] sm:$0xff]
    %v83 = vld [vmem:[#allocation3 + $0x148] sm:$0xff]
    %v84 = vld [vmem:[#allocation3 + $0x150] sm:$0xff]
    %v85 = vld [vmem:[#allocation3 + $0x158] sm:$0xff]
    %v86 = vld [vmem:[#allocation3 + $0x160] sm:$0xff]
    %v87 = vld [vmem:[#allocation3 + $0x168] sm:$0xff]
    %v88 = vld [vmem:[#allocation3 + $0x170] sm:$0xff]
    %v89 = vld [vmem:[#allocation3 + $0x178] sm:$0xff]
    %v90 = vld [vmem:[#allocation3 + $0x180] sm:$0xff]
    %v91 = vld [vmem:[#allocation3 + $0x188] sm:$0xff]
    %v92 = vld [vmem:[#allocation3 + $0x190] sm:$0xff]
    %v93 = vld [vmem:[#allocation3 + $0x198] sm:$0xff]
    %v94 = vld [vmem:[#allocation3 + $0x1a0] sm:$0xff]
    %v95 = vld [vmem:[#allocation3 + $0x1a8] sm:$0xff]
    %v96 = vld [vmem:[#allocation3 + $0x1b0] sm:$0xff]
    %v97 = vld [vmem:[#allocation3 + $0x1b8] sm:$0xff]
    %v98 = vld [vmem:[#allocation3 + $0x1c0] sm:$0xff]
    %v99 = vld [vmem:[#allocation3 + $0x1c8] sm:$0xff]
    %v100 = vld [vmem:[#allocation3 + $0x1d0] sm:$0xff]
    %v101 = vld [vmem:[#allocation3 + $0x1d8] sm:$0xff]
    %v102 = vld [vmem:[#allocation3 + $0x1e0] sm:$0xff]
    %v103 = vld [vmem:[#allocation3 + $0x1e8] sm:$0xff]
    %v104 = vld [vmem:[#allocation3 + $0x1f0] sm:$0xff]
    %v105 = vld [vmem:[#allocation3 + $0x1f8] sm:$0xff]
    %v106 = vld [vmem:[#allocation3 + $0x200] sm:$0xff]
    %v107 = vld [vmem:[#allocation3 + $0x208] sm:$0xff]
    %v108 = vld [vmem:[#allocation3 + $0x210] sm:$0xff]
    %v109 = vld [vmem:[#allocation3 + $0x218] sm:$0xff]
    %v110 = vld [vmem:[#allocation3 + $0x220] sm:$0xff]
    %v111 = vld [vmem:[#allocation3 + $0x228] sm:$0xff]
    %v112 = vld [vmem:[#allocation3 + $0x230] sm:$0xff]
    %v113 = vld [vmem:[#allocation3 + $0x238] sm:$0xff]
    %v114 = vld [vmem:[#allocation3 + $0x240] sm:$0xff]
    %v115 = vld [vmem:[#allocation3 + $0x248] sm:$0xff]
    %v116 = vld [vmem:[#allocation3 + $0x250] sm:$0xff]
    %v117 = vld [vmem:[#allocation3 + $0x258] sm:$0xff]
    %v118 = vld [vmem:[#allocation3 + $0x260] sm:$0xff]
    %v119 = vld [vmem:[#allocation3 + $0x268] sm:$0xff]
    %v120 = vld [vmem:[#allocation3 + $0x270] sm:$0xff]
    %v121 = vld [vmem:[#allocation3 + $0x278] sm:$0xff]
    %v122 = vld [vmem:[#allocation3 + $0x280] sm:$0xff]
    %v123 = vld [vmem:[#allocation3 + $0x288] sm:$0xff]
    %v124 = vld [vmem:[#allocation3 + $0x290] sm:$0xff]
    %v125 = vld [vmem:[#allocation3 + $0x298] sm:$0xff]
    %v126 = vld [vmem:[#allocation3 + $0x2a0] sm:$0xff]
    %v127 = vld [vmem:[#allocation3 + $0x2a8] sm:$0xff]
    %v128 = vld [vmem:[#allocation3 + $0x2b0] sm:$0xff]
    %v129 = vld [vmem:[#allocation3 + $0x2b8] sm:$0xff]
    %v130 = vld [vmem:[#allocation3 + $0x2c0] sm:$0xff]
    %v131 = vld [vmem:[#allocation3 + $0x2c8] sm:$0xff]
    %v132 = vld [vmem:[#allocation3 + $0x2d0] sm:$0xff]
    %v133 = vld [vmem:[#allocation3 + $0x2d8] sm:$0xff]
    %v134 = vld [vmem:[#allocation3 + $0x2e0] sm:$0xff]
    %v135 = vld [vmem:[#allocation3 + $0x2e8] sm:$0xff]
    %v136 = vld [vmem:[#allocation3 + $0x2f0] sm:$0xff]
    %v137 = vld [vmem:[#allocation3 + $0x2f8] sm:$0xff]
    %v138 = vld [vmem:[#allocation3 + $0x300] sm:$0xff]
    %v139 = vld [vmem:[#allocation3 + $0x308] sm:$0xff]
    %v140 = vld [vmem:[#allocation3 + $0x310] sm:$0xff]
    %v141 = vld [vmem:[#allocation3 + $0x318] sm:$0xff]
    %v142 = vld [vmem:[#allocation3 + $0x320] sm:$0xff]
    %v143 = vld [vmem:[#allocation3 + $0x328] sm:$0xff]
    %v144 = vld [vmem:[#allocation3 + $0x330] sm:$0xff]
    %v145 = vld [vmem:[#allocation3 + $0x338] sm:$0xff]
    %v146 = vld [vmem:[#allocation3 + $0x340] sm:$0xff]
    %v147 = vld [vmem:[#allocation3 + $0x348] sm:$0xff]
    %v148 = vld [vmem:[#allocation3 + $0x350] sm:$0xff]
    %v149 = vld [vmem:[#allocation3 + $0x358] sm:$0xff]
    %v150 = vld [vmem:[#allocation3 + $0x360] sm:$0xff]
    %v151 = vld [vmem:[#allocation3 + $0x368] sm:$0xff]
    %v152 = vld [vmem:[#allocation3 + $0x370] sm:$0xff]
    %v153 = vld [vmem:[#allocation3 + $0x378] sm:$0xff]
    %v154 = vld [vmem:[#allocation3 + $0x380] sm:$0xff]
    %v155 = vld [vmem:[#allocation3 + $0x388] sm:$0xff]
    %v156 = vld [vmem:[#allocation3 + $0x390] sm:$0xff]
    %v157 = vld [vmem:[#allocation3 + $0x398] sm:$0xff]
    %v158 = vld [vmem:[#allocation3 + $0x3a0] sm:$0xff]
    %v159 = vld [vmem:[#allocation3 + $0x3a8] sm:$0xff]
    %v160 = vld [vmem:[#allocation3 + $0x3b0] sm:$0xff]
    %v161 = vld [vmem:[#allocation3 + $0x3b8] sm:$0xff]
    %v162 = vld [vmem:[#allocation3 + $0x3c0] sm:$0xff]
    %v163 = vld [vmem:[#allocation3 + $0x3c8] sm:$0xff]
    %v164 = vld [vmem:[#allocation3 + $0x3d0] sm:$0xff]
    %v165 = vld [vmem:[#allocation3 + $0x3d8] sm:$0xff]
    %v166 = vld [vmem:[#allocation3 + $0x3e0] sm:$0xff]
    %v167 = vld [vmem:[#allocation3 + $0x3e8] sm:$0xff]
    %v168 = vld [vmem:[#allocation3 + $0x3f0] sm:$0xff]
    %v169 = vld [vmem:[#allocation3 + $0x3f8] sm:$0xff]
    %170 = vmatprep.subr.mxu0 0.0
    %171 = vmatpush1.msra.mxu0 %v42
    %172 = vmatprep.subr.mxu0 0.0
    %173 = vmatpush1.msra.mxu0 %v43
    %174 = vmatprep.subr.mxu0 0.0
    %175 = vmatpush1.msra.mxu0 %v44
    %176 = vmatprep.subr.mxu0 0.0
    %177 = vmatpush1.msra.mxu0 %v45
    %178 = vmatprep.subr.mxu0 0.0
    %179 = vmatpush1.msra.mxu0 %v46
    %180 = vmatprep.subr.mxu0 0.0
    %181 = vmatpush1.msra.mxu0 %v47
    %182 = vmatprep.subr.mxu0 0.0
    %183 = vmatpush1.msra.mxu0 %v48
    %184 = vmatprep.subr.mxu0 0.0
    %185 = vmatpush1.msra.mxu0 %v49
    %186 = vmatprep.subr.mxu0 0.0
    %187 = vmatpush1.msra.mxu0 %v50
    %188 = vmatprep.subr.mxu0 0.0
    %189 = vmatpush1.msra.mxu0 %v51
    %190 = vmatprep.subr.mxu0 0.0
    %191 = vmatpush1.msra.mxu0 %v52
    %192 = vmatprep.subr.mxu0 0.0
    %193 = vmatpush1.msra.mxu0 %v53
    %194 = vmatprep.subr.mxu0 0.0
    %195 = vmatpush1.msra.mxu0 %v54
    %196 = vmatprep.subr.mxu0 0.0
    %197 = vmatpush1.msra.mxu0 %v55
    %198 = vmatprep.subr.mxu0 0.0
    %199 = vmatpush1.msra.mxu0 %v56
    %200 = vmatprep.subr.mxu0 0.0
    %201 = vmatpush1.msra.mxu0 %v57
    %202 = vmatprep.subr.mxu0 0.0
    %203 = vmatpush1.msra.mxu0 %v58
    %204 = vmatprep.subr.mxu0 0.0
    %205 = vmatpush1.msra.mxu0 %v59
    %206 = vmatprep.subr.mxu0 0.0
    %207 = vmatpush1.msra.mxu0 %v60
    %208 = vmatprep.subr.mxu0 0.0
    %209 = vmatpush1.msra.mxu0 %v61
    %210 = vmatprep.subr.mxu0 0.0
    %211 = vmatpush1.msra.mxu0 %v62
    %212 = vmatprep.subr.mxu0 0.0
    %213 = vmatpush1.msra.mxu0 %v63
    %214 = vmatprep.subr.mxu0 0.0
    %215 = vmatpush1.msra.mxu0 %v64
    %216 = vmatprep.subr.mxu0 0.0
    %217 = vmatpush1.msra.mxu0 %v65
    %218 = vmatprep.subr.mxu0 0.0
    %219 = vmatpush1.msra.mxu0 %v66
    %220 = vmatprep.subr.mxu0 0.0
    %221 = vmatpush1.msra.mxu0 %v67
    %222 = vmatprep.subr.mxu0 0.0
    %223 = vmatpush1.msra.mxu0 %v68
    %224 = vmatprep.subr.mxu0 0.0
    %225 = vmatpush1.msra.mxu0 %v69
    %226 = vmatprep.subr.mxu0 0.0
    %227 = vmatpush1.msra.mxu0 %v70
    %228 = vmatprep.subr.mxu0 0.0
    %229 = vmatpush1.msra.mxu0 %v71
    %230 = vmatprep.subr.mxu0 0.0
    %231 = vmatpush1.msra.mxu0 %v72
    %232 = vmatprep.subr.mxu0 0.0
    %233 = vmatpush1.msra.mxu0 %v73
    %234 = vmatprep.mubr.f32.mxu0 %v35
    %235 = vmatmul.mubr.f32.gmra.mrb[0].mxu0 %v34
    %v236 = vpop.f32.mrb[0].mxu0
    %v237 = vadd.f32 0.0, %v236
    %v238 = vpop.f32.mrb[0].mxu0
    %239 = vdwg.mxu0
    %240 = vmatprep.subr.mxu0 0.0
    %241 = vmatpush1.msra.mxu0 %v74
    %242 = vmatprep.subr.mxu0 0.0
    %243 = vmatpush1.msra.mxu0 %v75
    %244 = vmatprep.subr.mxu0 0.0
    %245 = vmatpush1.msra.mxu0 %v76
    %246 = vmatprep.subr.mxu0 0.0
    %247 = vmatpush1.msra.mxu0 %v77
    %248 = vmatprep.subr.mxu0 0.0
    %249 = vmatpush1.msra.mxu0 %v78
    %250 = vmatprep.subr.mxu0 0.0
    %251 = vmatpush1.msra.mxu0 %v79
    %252 = vmatprep.subr.mxu0 0.0
    %253 = vmatpush1.msra.mxu0 %v80
    %254 = vmatprep.subr.mxu0 0.0
    %255 = vmatpush1.msra.mxu0 %v81
    %256 = vmatprep.subr.mxu0 0.0
    %257 = vmatpush1.msra.mxu0 %v82
    %258 = vmatprep.subr.mxu0 0.0
    %259 = vmatpush1.msra.mxu0 %v83
    %260 = vmatprep.subr.mxu0 0.0
    %261 = vmatpush1.msra.mxu0 %v84
    %262 = vmatprep.subr.mxu0 0.0
    %263 = vmatpush1.msra.mxu0 %v85
    %264 = vmatprep.subr.mxu0 0.0
    %265 = vmatpush1.msra.mxu0 %v86
    %266 = vmatprep.subr.mxu0 0.0
    %267 = vmatpush1.msra.mxu0 %v87
    %268 = vmatprep.subr.mxu0 0.0
    %269 = vmatpush1.msra.mxu0 %v88
    %270 = vmatprep.subr.mxu0 0.0
    %271 = vmatpush1.msra.mxu0 %v89
    %272 = vmatprep.subr.mxu0 0.0
    %273 = vmatpush1.msra.mxu0 %v90
    %274 = vmatprep.subr.mxu0 0.0
    %275 = vmatpush1.msra.mxu0 %v91
    %276 = vmatprep.subr.mxu0 0.0
    %277 = vmatpush1.msra.mxu0 %v92
    %278 = vmatprep.subr.mxu0 0.0
    %279 = vmatpush1.msra.mxu0 %v93
    %280 = vmatprep.subr.mxu0 0.0
    %281 = vmatpush1.msra.mxu0 %v94
    %282 = vmatprep.subr.mxu0 0.0
    %283 = vmatpush1.msra.mxu0 %v95
    %284 = vmatprep.subr.mxu0 0.0
    %285 = vmatpush1.msra.mxu0 %v96
    %286 = vmatprep.subr.mxu0 0.0
    %287 = vmatpush1.msra.mxu0 %v97
    %288 = vmatprep.subr.mxu0 0.0
    %289 = vmatpush1.msra.mxu0 %v98
    %290 = vmatprep.subr.mxu0 0.0
    %291 = vmatpush1.msra.mxu0 %v99
    %292 = vmatprep.subr.mxu0 0.0
    %293 = vmatpush1.msra.mxu0 %v100
    %294 = vmatprep.subr.mxu0 0.0
    %295 = vmatpush1.msra.mxu0 %v101
    %296 = vmatprep.subr.mxu0 0.0
    %297 = vmatpush1.msra.mxu0 %v102
    %298 = vmatprep.subr.mxu0 0.0
    %299 = vmatpush1.msra.mxu0 %v103
    %300 = vmatprep.subr.mxu0 0.0
    %301 = vmatpush1.msra.mxu0 %v104
    %302 = vmatprep.subr.mxu0 0.0
    %303 = vmatpush1.msra.mxu0 %v105
    %304 = vmatprep.mubr.f32.mxu0 %v37
    %305 = vmatmul.mubr.f32.gmra.mrb[0].mxu0 %v36
    %v306 = vpop.f32.mrb[0].mxu0
    %v307 = vadd.f32 %v237, %v306
    %v308 = vpop.f32.mrb[0].mxu0
    %309 = vdwg.mxu0
    %310 = vmatprep.subr.mxu0 0.0
    %311 = vmatpush1.msra.mxu0 %v106
    %312 = vmatprep.subr.mxu0 0.0
    %313 = vmatpush1.msra.mxu0 %v107
    %314 = vmatprep.subr.mxu0 0.0
    %315 = vmatpush1.msra.mxu0 %v108
    %316 = vmatprep.subr.mxu0 0.0
    %317 = vmatpush1.msra.mxu0 %v109
    %318 = vmatprep.subr.mxu0 0.0
    %319 = vmatpush1.msra.mxu0 %v110
    %320 = vmatprep.subr.mxu0 0.0
    %321 = vmatpush1.msra.mxu0 %v111
    %322 = vmatprep.subr.mxu0 0.0
    %323 = vmatpush1.msra.mxu0 %v112
    %324 = vmatprep.subr.mxu0 0.0
    %325 = vmatpush1.msra.mxu0 %v113
    %326 = vmatprep.subr.mxu0 0.0
    %327 = vmatpush1.msra.mxu0 %v114
    %328 = vmatprep.subr.mxu0 0.0
    %329 = vmatpush1.msra.mxu0 %v115
    %330 = vmatprep.subr.mxu0 0.0
    %331 = vmatpush1.msra.mxu0 %v116
    %332 = vmatprep.subr.mxu0 0.0
    %333 = vmatpush1.msra.mxu0 %v117
    %334 = vmatprep.subr.mxu0 0.0
    %335 = vmatpush1.msra.mxu0 %v118
    %336 = vmatprep.subr.mxu0 0.0
    %337 = vmatpush1.msra.mxu0 %v119
    %338 = vmatprep.subr.mxu0 0.0
    %339 = vmatpush1.msra.mxu0 %v120
    %340 = vmatprep.subr.mxu0 0.0
    %341 = vmatpush1.msra.mxu0 %v121
    %342 = vmatprep.subr.mxu0 0.0
    %343 = vmatpush1.msra.mxu0 %v122
    %344 = vmatprep.subr.mxu0 0.0
    %345 = vmatpush1.msra.mxu0 %v123
    %346 = vmatprep.subr.mxu0 0.0
    %347 = vmatpush1.msra.mxu0 %v124
    %348 = vmatprep.subr.mxu0 0.0
    %349 = vmatpush1.msra.mxu0 %v125
    %350 = vmatprep.subr.mxu0 0.0
    %351 = vmatpush1.msra.mxu0 %v126
    %352 = vmatprep.subr.mxu0 0.0
    %353 = vmatpush1.msra.mxu0 %v127
    %354 = vmatprep.subr.mxu0 0.0
    %355 = vmatpush1.msra.mxu0 %v128
    %356 = vmatprep.subr.mxu0 0.0
    %357 = vmatpush1.msra.mxu0 %v129
    %358 = vmatprep.subr.mxu0 0.0
    %359 = vmatpush1.msra.mxu0 %v130
    %360 = vmatprep.subr.mxu0 0.0
    %361 = vmatpush1.msra.mxu0 %v131
    %362 = vmatprep.subr.mxu0 0.0
    %363 = vmatpush1.msra.mxu0 %v132
    %364 = vmatprep.subr.mxu0 0.0
    %365 = vmatpush1.msra.mxu0 %v133
    %366 = vmatprep.subr.mxu0 0.0
    %367 = vmatpush1.msra.mxu0 %v134
    %368 = vmatprep.subr.mxu0 0.0
    %369 = vmatpush1.msra.mxu0 %v135
    %370 = vmatprep.subr.mxu0 0.0
    %371 = vmatpush1.msra.mxu0 %v136
    %372 = vmatprep.subr.mxu0 0.0
    %373 = vmatpush1.msra.mxu0 %v137
    %374 = vmatprep.mubr.f32.mxu0 %v39
    %375 = vmatmul.mubr.f32.gmra.mrb[0].mxu0 %v38
    %v376 = vpop.f32.mrb[0].mxu0
    %v377 = vadd.f32 %v307, %v376
    %v378 = vpop.f32.mrb[0].mxu0
    %379 = vdwg.mxu0
    %380 = vmatprep.subr.mxu0 0.0
    %381 = vmatpush1.msra.mxu0 %v138
    %382 = vmatprep.subr.mxu0 0.0
    %383 = vmatpush1.msra.mxu0 %v139
    %384 = vmatprep.subr.mxu0 0.0
    %385 = vmatpush1.msra.mxu0 %v140
    %386 = vmatprep.subr.mxu0 0.0
    %387 = vmatpush1.msra.mxu0 %v141
    %388 = vmatprep.subr.mxu0 0.0
    %389 = vmatpush1.msra.mxu0 %v142
    %390 = vmatprep.subr.mxu0 0.0
    %391 = vmatpush1.msra.mxu0 %v143
    %392 = vmatprep.subr.mxu0 0.0
    %393 = vmatpush1.msra.mxu0 %v144
    %394 = vmatprep.subr.mxu0 0.0
    %395 = vmatpush1.msra.mxu0 %v145
    %396 = vmatprep.subr.mxu0 0.0
    %397 = vmatpush1.msra.mxu0 %v146
    %398 = vmatprep.subr.mxu0 0.0
    %399 = vmatpush1.msra.mxu0 %v147
    %400 = vmatprep.subr.mxu0 0.0
    %401 = vmatpush1.msra.mxu0 %v148
    %402 = vmatprep.subr.mxu0 0.0
    %403 = vmatpush1.msra.mxu0 %v149
    %404 = vmatprep.subr.mxu0 0.0
    %405 = vmatpush1.msra.mxu0 %v150
    %406 = vmatprep.subr.mxu0 0.0
    %407 = vmatpush1.msra.mxu0 %v151
    %408 = vmatprep.subr.mxu0 0.0
    %409 = vmatpush1.msra.mxu0 %v152
    %410 = vmatprep.subr.mxu0 0.0
    %411 = vmatpush1.msra.mxu0 %v153
    %412 = vmatprep.subr.mxu0 0.0
    %413 = vmatpush1.msra.mxu0 %v154
    %414 = vmatprep.subr.mxu0 0.0
    %415 = vmatpush1.msra.mxu0 %v155
    %416 = vmatprep.subr.mxu0 0.0
    %417 = vmatpush1.msra.mxu0 %v156
    %418 = vmatprep.subr.mxu0 0.0
    %419 = vmatpush1.msra.mxu0 %v157
    %420 = vmatprep.subr.mxu0 0.0
    %421 = vmatpush1.msra.mxu0 %v158
    %422 = vmatprep.subr.mxu0 0.0
    %423 = vmatpush1.msra.mxu0 %v159
    %424 = vmatprep.subr.mxu0 0.0
    %425 = vmatpush1.msra.mxu0 %v160
    %426 = vmatprep.subr.mxu0 0.0
    %427 = vmatpush1.msra.mxu0 %v161
    %428 = vmatprep.subr.mxu0 0.0
    %429 = vmatpush1.msra.mxu0 %v162
    %430 = vmatprep.subr.mxu0 0.0
    %431 = vmatpush1.msra.mxu0 %v163
    %432 = vmatprep.subr.mxu0 0.0
    %433 = vmatpush1.msra.mxu0 %v164
    %434 = vmatprep.subr.mxu0 0.0
    %435 = vmatpush1.msra.mxu0 %v165
    %436 = vmatprep.subr.mxu0 0.0
    %437 = vmatpush1.msra.mxu0 %v166
    %438 = vmatprep.subr.mxu0 0.0
    %439 = vmatpush1.msra.mxu0 %v167
    %440 = vmatprep.subr.mxu0 0.0
    %441 = vmatpush1.msra.mxu0 %v168
    %442 = vmatprep.subr.mxu0 0.0
    %443 = vmatpush1.msra.mxu0 %v169
    %444 = vmatprep.mubr.f32.mxu0 %v41
    %445 = vmatmul.mubr.f32.gmra.mrb[0].mxu0 %v40
    %v446 = vpop.f32.mrb[0].mxu0
    %v447 = vadd.f32 %v377, %v446
    %v448 = vpop.f32.mrb[0].mxu0
    %449 = vdwg.mxu0
    %v450 = vadd.f32 %v33, %v447
    %451 = vst [vmem:[#allocation2] sm:$0xff] %v450
    // Predicated region
    $region22: #{agent_forward.3} parent=1 // pred_check
      %p452 = pneg %p28
    $region23: #{agent_forward.3} parent=1 // pred_check_branch
      %454 = sbr.rel (%p452) target = $region25
    $region24: #{agent_forward.3} parent=1 // pred_region
      %v455 = vld [vmem:[#allocation2] sm:$0xff]
      %v456 = vld [vmem:[%s2] sm:$0x1]
      %v458 = vlaneseq
      %v459 = vshrl.u32 %v458, 7
      %v460 = vsub.s32 0, %v459
      %v461 = vrot.slane %v456, %v460
      %v463 = vadd.f32 %v455, %v461
      %464 = vst [vmem:[%s3] sm:$0xff] %v463
    $region25: #{agent_forward.3} parent=1 // pred_fallthru
      _
    // Predicated region
    $region26: #{agent_forward.3} parent=1 // pred_check
      _
    $region27: #{agent_forward.3} parent=1 // pred_check_branch
      %466 = sbr.rel (0) target = $region29
    $region28: #{agent_forward.3} parent=1 // pred_region
      _
    $region29: #{agent_forward.3} parent=1 // pred_fallthru
      _
    // Predicated region
    $region30: #{agent_forward.3} parent=1 // pred_check
      _
    $region31: #{agent_forward.3} parent=1 // pred_check_branch
      %468 = sbr.rel (0) target = $region33
    $region32: #{agent_forward.3} parent=1 // pred_region
      _
    $region33: #{agent_forward.3} parent=1 // pred_fallthru
      _
    %469 = vsyncpa [#allocation4], 1

// kernel: agent_forward.4
$region0: #{agent_forward.4}
  #allocation0 [shape = 'u32[]', space=smem, size = 0x4, offset = 0x4, fixed_abs, tag = 'smem constant byte address 0x4 - core index']
  #allocation1 [shape = 'u32[144,128]{1,0:T(1,128)}', space=vmem, size = 0x12000, scoped, tag = 'internal scratch']
  %s0 = inlined_call_operand.vmem [shape: f32[2,4,256], index: 0, kind: input, shape index: {}]
  %s1 = inlined_call_operand.vmem [shape: f32[128,4], index: 1, kind: input, shape index: {}]
  %s2 = inlined_call_operand.vmem [shape: f32[128,1], index: 2, kind: input, shape index: {}]
  %s3 = inlined_call_operand.vmem [shape: f32[2,128,256], index: 3, kind: output, shape index: {}]
  %s4 = sld [smem:[#allocation0]]
  $region22: #{agent_forward.4} parent=0
    _
  %s6 = ssub.s32 1, %s4
  %s7 = scalar_select 0, %s6, %s4
  // Predicated region
  $region2: #{agent_forward.4} parent=0 // pred_check
    _
  $region3: #{agent_forward.4} parent=0 // pred_check_branch
    %9 = sbr.rel (0) target = $region5
  $region4: #{agent_forward.4} parent=0 // pred_region
    _
  $region5: #{agent_forward.4} parent=0 // pred_fallthru
    _
  // Predicated region
  $region6: #{agent_forward.4} parent=0 // pred_check
    _
  $region7: #{agent_forward.4} parent=0 // pred_check_branch
    %11 = sbr.rel (0) target = $region9
  $region8: #{agent_forward.4} parent=0 // pred_region
    _
  $region9: #{agent_forward.4} parent=0 // pred_fallthru
    _
  // Predicated region
  $region10: #{agent_forward.4} parent=0 // pred_check
    _
  $region11: #{agent_forward.4} parent=0 // pred_check_branch
    %13 = sbr.rel (0) target = $region13
  $region12: #{agent_forward.4} parent=0 // pred_region
    _
  $region13: #{agent_forward.4} parent=0 // pred_fallthru
    _
  %v14 = vld [vmem:[%s1] sm:$0xff]
  %v15 = vld [vmem:[%s1 + $0x8] sm:$0xff]
  %v16 = vld [vmem:[%s1 + $0x10] sm:$0xff]
  %v17 = vld [vmem:[%s1 + $0x18] sm:$0xff]
  %v18 = vld [vmem:[%s1 + $0x20] sm:$0xff]
  %v19 = vld [vmem:[%s1 + $0x28] sm:$0xff]
  %v20 = vld [vmem:[%s1 + $0x30] sm:$0xff]
  %v21 = vld [vmem:[%s1 + $0x38] sm:$0xff]
  %v22 = vld [vmem:[%s1 + $0x40] sm:$0xff]
  %v23 = vld [vmem:[%s1 + $0x48] sm:$0xff]
  %v24 = vld [vmem:[%s1 + $0x50] sm:$0xff]
  %v25 = vld [vmem:[%s1 + $0x58] sm:$0xff]
  %v26 = vld [vmem:[%s1 + $0x60] sm:$0xff]
  %v27 = vld [vmem:[%s1 + $0x68] sm:$0xff]
  %v28 = vld [vmem:[%s1 + $0x70] sm:$0xff]
  %v29 = vld [vmem:[%s1 + $0x78] sm:$0xff]
  %v30 = vld [vmem:[%s2] sm:$0xff]
  %v31 = vld [vmem:[%s2 + $0x8] sm:$0xff]
  %v32 = vld [vmem:[%s2 + $0x10] sm:$0xff]
  %v33 = vld [vmem:[%s2 + $0x18] sm:$0xff]
  %v34 = vld [vmem:[%s2 + $0x20] sm:$0xff]
  %v35 = vld [vmem:[%s2 + $0x28] sm:$0xff]
  %v36 = vld [vmem:[%s2 + $0x30] sm:$0xff]
  %v37 = vld [vmem:[%s2 + $0x38] sm:$0xff]
  %v38 = vld [vmem:[%s2 + $0x40] sm:$0xff]
  %v39 = vld [vmem:[%s2 + $0x48] sm:$0xff]
  %v40 = vld [vmem:[%s2 + $0x50] sm:$0xff]
  %v41 = vld [vmem:[%s2 + $0x58] sm:$0xff]
  %v42 = vld [vmem:[%s2 + $0x60] sm:$0xff]
  %v43 = vld [vmem:[%s2 + $0x68] sm:$0xff]
  %v44 = vld [vmem:[%s2 + $0x70] sm:$0xff]
  %v45 = vld [vmem:[%s2 + $0x78] sm:$0xff]
  %v46 = vld [vmem:[%s0] sm:$0xff]
  %48 = vset.pattern.permute.xlu0 0
  %49 = vperm.xlu0 %48, %v30
  %v50 = vpop.permute.xlu0 %49
  %53 = vset.pattern.permute.xlu0 0
  %54 = vperm.xlu0 %53, %v31
  %v55 = vpop.permute.xlu0 %54
  %58 = vset.pattern.permute.xlu0 0
  %59 = vperm.xlu0 %58, %v32
  %v60 = vpop.permute.xlu0 %59
  %63 = vset.pattern.permute.xlu0 0
  %64 = vperm.xlu0 %63, %v33
  %v65 = vpop.permute.xlu0 %64
  %68 = vset.pattern.permute.xlu0 0
  %69 = vperm.xlu0 %68, %v34
  %v70 = vpop.permute.xlu0 %69
  %73 = vset.pattern.permute.xlu0 0
  %74 = vperm.xlu0 %73, %v35
  %v75 = vpop.permute.xlu0 %74
  %78 = vset.pattern.permute.xlu0 0
  %79 = vperm.xlu0 %78, %v36
  %v80 = vpop.permute.xlu0 %79
  %83 = vset.pattern.permute.xlu0 0
  %84 = vperm.xlu0 %83, %v37
  %v85 = vpop.permute.xlu0 %84
  %88 = vset.pattern.permute.xlu0 0
  %89 = vperm.xlu0 %88, %v38
  %v90 = vpop.permute.xlu0 %89
  %93 = vset.pattern.permute.xlu0 0
  %94 = vperm.xlu0 %93, %v39
  %v95 = vpop.permute.xlu0 %94
  %98 = vset.pattern.permute.xlu0 0
  %99 = vperm.xlu0 %98, %v40
  %v100 = vpop.permute.xlu0 %99
  %103 = vset.pattern.permute.xlu0 0
  %104 = vperm.xlu0 %103, %v41
  %v105 = vpop.permute.xlu0 %104
  %108 = vset.pattern.permute.xlu0 0
  %109 = vperm.xlu0 %108, %v42
  %v110 = vpop.permute.xlu0 %109
  %113 = vset.pattern.permute.xlu0 0
  %114 = vperm.xlu0 %113, %v43
  %v115 = vpop.permute.xlu0 %114
  %118 = vset.pattern.permute.xlu0 0
  %119 = vperm.xlu0 %118, %v44
  %v120 = vpop.permute.xlu0 %119
  %123 = vset.pattern.permute.xlu0 0
  %124 = vperm.xlu0 %123, %v45
  %v125 = vpop.permute.xlu0 %124
  %v128 = vcombine.high %v46, %v46
  %vm129 = vcmask 31744
  %v131 = vsel %vm129, %v14, 0
  %v134 = vsel %vm129, %v15, 0
  %v137 = vsel %vm129, %v16, 0
  %v140 = vsel %vm129, %v17, 0
  %v143 = vsel %vm129, %v18, 0
  %v146 = vsel %vm129, %v19, 0
  %v149 = vsel %vm129, %v20, 0
  %v152 = vsel %vm129, %v21, 0
  %v155 = vsel %vm129, %v22, 0
  %v158 = vsel %vm129, %v23, 0
  %v161 = vsel %vm129, %v24, 0
  %v164 = vsel %vm129, %v25, 0
  %v167 = vsel %vm129, %v26, 0
  %v170 = vsel %vm129, %v27, 0
  %v173 = vsel %vm129, %v28, 0
  %v176 = vsel %vm129, %v29, 0
  %vm178 = vcmask 1043456
  %v179 = vsel %vm178, %v46, 0
  %v181 = vsel %vm178, %v128, 0
  %183 = vmatprep.subr.mxu0 %v181
  %184 = vmatpush1.msra.mxu0 %v179
  %185 = vmatprep.subr.mxu0 0.0
  %186 = vmatpush1.msra.mxu0 0.0
  %187 = vmatprep.subr.mxu0 0.0
  %188 = vmatpush1.msra.mxu0 0.0
  %189 = vmatprep.subr.mxu0 0.0
  %190 = vmatpush1.msra.mxu0 0.0
  %191 = vmatprep.subr.mxu0 0.0
  %192 = vmatpush1.msra.mxu0 0.0
  %193 = vmatprep.subr.mxu0 0.0
  %194 = vmatpush1.msra.mxu0 0.0
  %195 = vmatprep.subr.mxu0 0.0
  %196 = vmatpush1.msra.mxu0 0.0
  %197 = vmatprep.subr.mxu0 0.0
  %198 = vmatpush1.msra.mxu0 0.0
  %199 = vmatprep.subr.mxu0 0.0
  %200 = vmatpush1.msra.mxu0 0.0
  %201 = vmatprep.subr.mxu0 0.0
  %202 = vmatpush1.msra.mxu0 0.0
  %203 = vmatprep.subr.mxu0 0.0
  %204 = vmatpush1.msra.mxu0 0.0
  %205 = vmatprep.subr.mxu0 0.0
  %206 = vmatpush1.msra.mxu0 0.0
  %207 = vmatprep.subr.mxu0 0.0
  %208 = vmatpush1.msra.mxu0 0.0
  %209 = vmatprep.subr.mxu0 0.0
  %210 = vmatpush1.msra.mxu0 0.0
  %211 = vmatprep.subr.mxu0 0.0
  %212 = vmatpush1.msra.mxu0 0.0
  %213 = vmatprep.subr.mxu0 0.0
  %214 = vmatpush1.msra.mxu0 0.0
  %215 = vmatprep.subr.mxu0 0.0
  %216 = vmatpush1.msra.mxu0 0.0
  %217 = vmatprep.subr.mxu0 0.0
  %218 = vmatpush1.msra.mxu0 0.0
  %219 = vmatprep.subr.mxu0 0.0
  %220 = vmatpush1.msra.mxu0 0.0
  %221 = vmatprep.subr.mxu0 0.0
  %222 = vmatpush1.msra.mxu0 0.0
  %223 = vmatprep.subr.mxu0 0.0
  %224 = vmatpush1.msra.mxu0 0.0
  %225 = vmatprep.subr.mxu0 0.0
  %226 = vmatpush1.msra.mxu0 0.0
  %227 = vmatprep.subr.mxu0 0.0
  %228 = vmatpush1.msra.mxu0 0.0
  %229 = vmatprep.subr.mxu0 0.0
  %230 = vmatpush1.msra.mxu0 0.0
  %231 = vmatprep.subr.mxu0 0.0
  %232 = vmatpush1.msra.mxu0 0.0
  %233 = vmatprep.subr.mxu0 0.0
  %234 = vmatpush1.msra.mxu0 0.0
  %235 = vmatprep.subr.mxu0 0.0
  %236 = vmatpush1.msra.mxu0 0.0
  %237 = vmatprep.subr.mxu0 0.0
  %238 = vmatpush1.msra.mxu0 0.0
  %239 = vmatprep.subr.mxu0 0.0
  %240 = vmatpush1.msra.mxu0 0.0
  %241 = vmatprep.subr.mxu0 0.0
  %242 = vmatpush1.msra.mxu0 0.0
  %243 = vmatprep.subr.mxu0 0.0
  %244 = vmatpush1.msra.mxu0 0.0
  %245 = vmatprep.subr.mxu0 0.0
  %246 = vmatpush1.msra.mxu0 0.0
  %247 = vmatprep.mubr.f32.mxu0 0.0
  %248 = vmatmul.mubr.f32.gmra.mrb[0].mxu0 %v131
  %v249 = vpop.f32.mrb[0].mxu0
  %v250 = vadd.f32 %v50, %v249
  %v251 = vpop.f32.mrb[0].mxu0
  %v252 = vadd.f32 %v50, %v251
  %253 = vmatprep.mubr.f32.mxu0 0.0
  %254 = vmatmul.mubr.f32.gmra.mrb[0].mxu0 %v134
  %v255 = vpop.f32.mrb[0].mxu0
  %v256 = vadd.f32 %v55, %v255
  %v257 = vpop.f32.mrb[0].mxu0
  %v258 = vadd.f32 %v55, %v257
  %259 = vmatprep.mubr.f32.mxu0 0.0
  %260 = vmatmul.mubr.f32.gmra.mrb[0].mxu0 %v137
  %v261 = vpop.f32.mrb[0].mxu0
  %v262 = vadd.f32 %v60, %v261
  %v263 = vpop.f32.mrb[0].mxu0
  %v264 = vadd.f32 %v60, %v263
  %265 = vmatprep.mubr.f32.mxu0 0.0
  %266 = vmatmul.mubr.f32.gmra.mrb[0].mxu0 %v140
  %v267 = vpop.f32.mrb[0].mxu0
  %v268 = vadd.f32 %v65, %v267
  %v269 = vpop.f32.mrb[0].mxu0
  %v270 = vadd.f32 %v65, %v269
  %271 = vmatprep.mubr.f32.mxu0 0.0
  %272 = vmatmul.mubr.f32.gmra.mrb[0].mxu0 %v143
  %v273 = vpop.f32.mrb[0].mxu0
  %v274 = vadd.f32 %v70, %v273
  %v275 = vpop.f32.mrb[0].mxu0
  %v276 = vadd.f32 %v70, %v275
  %277 = vmatprep.mubr.f32.mxu0 0.0
  %278 = vmatmul.mubr.f32.gmra.mrb[0].mxu0 %v146
  %v279 = vpop.f32.mrb[0].mxu0
  %v280 = vadd.f32 %v75, %v279
  %v281 = vpop.f32.mrb[0].mxu0
  %v282 = vadd.f32 %v75, %v281
  %283 = vmatprep.mubr.f32.mxu0 0.0
  %284 = vmatmul.mubr.f32.gmra.mrb[0].mxu0 %v149
  %v285 = vpop.f32.mrb[0].mxu0
  %v286 = vadd.f32 %v80, %v285
  %v287 = vpop.f32.mrb[0].mxu0
  %v288 = vadd.f32 %v80, %v287
  %289 = vmatprep.mubr.f32.mxu0 0.0
  %290 = vmatmul.mubr.f32.gmra.mrb[0].mxu0 %v152
  %v291 = vpop.f32.mrb[0].mxu0
  %v292 = vadd.f32 %v85, %v291
  %v293 = vpop.f32.mrb[0].mxu0
  %v294 = vadd.f32 %v85, %v293
  %295 = vmatprep.mubr.f32.mxu0 0.0
  %296 = vmatmul.mubr.f32.gmra.mrb[0].mxu0 %v155
  %v297 = vpop.f32.mrb[0].mxu0
  %v298 = vadd.f32 %v90, %v297
  %v299 = vpop.f32.mrb[0].mxu0
  %v300 = vadd.f32 %v90, %v299
  %301 = vmatprep.mubr.f32.mxu0 0.0
  %302 = vmatmul.mubr.f32.gmra.mrb[0].mxu0 %v158
  %v303 = vpop.f32.mrb[0].mxu0
  %v304 = vadd.f32 %v95, %v303
  %v305 = vpop.f32.mrb[0].mxu0
  %v306 = vadd.f32 %v95, %v305
  %307 = vmatprep.mubr.f32.mxu0 0.0
  %308 = vmatmul.mubr.f32.gmra.mrb[0].mxu0 %v161
  %v309 = vpop.f32.mrb[0].mxu0
  %v310 = vadd.f32 %v100, %v309
  %v311 = vpop.f32.mrb[0].mxu0
  %v312 = vadd.f32 %v100, %v311
  %313 = vmatprep.mubr.f32.mxu0 0.0
  %314 = vmatmul.mubr.f32.gmra.mrb[0].mxu0 %v164
  %v315 = vpop.f32.mrb[0].mxu0
  %v316 = vadd.f32 %v105, %v315
  %v317 = vpop.f32.mrb[0].mxu0
  %v318 = vadd.f32 %v105, %v317
  %319 = vmatprep.mubr.f32.mxu0 0.0
  %320 = vmatmul.mubr.f32.gmra.mrb[0].mxu0 %v167
  %v321 = vpop.f32.mrb[0].mxu0
  %v322 = vadd.f32 %v110, %v321
  %v323 = vpop.f32.mrb[0].mxu0
  %v324 = vadd.f32 %v110, %v323
  %325 = vmatprep.mubr.f32.mxu0 0.0
  %326 = vmatmul.mubr.f32.gmra.mrb[0].mxu0 %v170
  %v327 = vpop.f32.mrb[0].mxu0
  %v328 = vadd.f32 %v115, %v327
  %v329 = vpop.f32.mrb[0].mxu0
  %v330 = vadd.f32 %v115, %v329
  %331 = vmatprep.mubr.f32.mxu0 0.0
  %332 = vmatmul.mubr.f32.gmra.mrb[0].mxu0 %v173
  %v333 = vpop.f32.mrb[0].mxu0
  %v334 = vadd.f32 %v120, %v333
  %v335 = vpop.f32.mrb[0].mxu0
  %v336 = vadd.f32 %v120, %v335
  %337 = vmatprep.mubr.f32.mxu0 0.0
  %338 = vmatmul.mubr.f32.gmra.mrb[0].mxu0 %v176
  %v339 = vpop.f32.mrb[0].mxu0
  %v340 = vadd.f32 %v125, %v339
  %v341 = vpop.f32.mrb[0].mxu0
  %v342 = vadd.f32 %v125, %v341
  %343 = vdwg.mxu0
  %344 = vst [vmem:[%s3] sm:$0xff] %v250
  %345 = vst [vmem:[%s3 + $0x8] sm:$0xff] %v252
  %346 = vst [vmem:[%s3 + $0x10] sm:$0xff] %v256
  %347 = vst [vmem:[%s3 + $0x18] sm:$0xff] %v258
  %348 = vst [vmem:[%s3 + $0x20] sm:$0xff] %v262
  %349 = vst [vmem:[%s3 + $0x28] sm:$0xff] %v264
  %350 = vst [vmem:[%s3 + $0x30] sm:$0xff] %v268
  %351 = vst [vmem:[%s3 + $0x38] sm:$0xff] %v270
  %352 = vst [vmem:[%s3 + $0x40] sm:$0xff] %v274
  %353 = vst [vmem:[%s3 + $0x48] sm:$0xff] %v276
  %354 = vst [vmem:[%s3 + $0x50] sm:$0xff] %v280
  %355 = vst [vmem:[%s3 + $0x58] sm:$0xff] %v282
  %356 = vst [vmem:[%s3 + $0x60] sm:$0xff] %v286
  %357 = vst [vmem:[%s3 + $0x68] sm:$0xff] %v288
  %358 = vst [vmem:[%s3 + $0x70] sm:$0xff] %v292
  %359 = vst [vmem:[%s3 + $0x78] sm:$0xff] %v294
  %360 = vst [vmem:[%s3 + $0x80] sm:$0xff] %v298
  %361 = vst [vmem:[%s3 + $0x88] sm:$0xff] %v300
  %362 = vst [vmem:[%s3 + $0x90] sm:$0xff] %v304
  %363 = vst [vmem:[%s3 + $0x98] sm:$0xff] %v306
  %364 = vst [vmem:[%s3 + $0xa0] sm:$0xff] %v310
  %365 = vst [vmem:[%s3 + $0xa8] sm:$0xff] %v312
  %366 = vst [vmem:[%s3 + $0xb0] sm:$0xff] %v316
  %367 = vst [vmem:[%s3 + $0xb8] sm:$0xff] %v318
  %368 = vst [vmem:[%s3 + $0xc0] sm:$0xff] %v322
  %369 = vst [vmem:[%s3 + $0xc8] sm:$0xff] %v324
  %370 = vst [vmem:[%s3 + $0xd0] sm:$0xff] %v328
  %371 = vst [vmem:[%s3 + $0xd8] sm:$0xff] %v330
  %372 = vst [vmem:[%s3 + $0xe0] sm:$0xff] %v334
  %373 = vst [vmem:[%s3 + $0xe8] sm:$0xff] %v336
  %374 = vst [vmem:[%s3 + $0xf0] sm:$0xff] %v340
  %375 = vst [vmem:[%s3 + $0xf8] sm:$0xff] %v342
  %s376 = scalar_lea.vmem %s0, 8
  %v377 = vld [vmem:[%s376] sm:$0xff]
  %v379 = vcombine.high %v377, %v377
  %v380 = vsel %vm178, %v377, 0
  %v382 = vsel %vm178, %v379, 0
  %384 = vmatprep.subr.mxu0 %v382
  %385 = vmatpush1.msra.mxu0 %v380
  %386 = vmatprep.subr.mxu0 0.0
  %387 = vmatpush1.msra.mxu0 0.0
  %388 = vmatprep.subr.mxu0 0.0
  %389 = vmatpush1.msra.mxu0 0.0
  %390 = vmatprep.subr.mxu0 0.0
  %391 = vmatpush1.msra.mxu0 0.0
  %392 = vmatprep.subr.mxu0 0.0
  %393 = vmatpush1.msra.mxu0 0.0
  %394 = vmatprep.subr.mxu0 0.0
  %395 = vmatpush1.msra.mxu0 0.0
  %396 = vmatprep.subr.mxu0 0.0
  %397 = vmatpush1.msra.mxu0 0.0
  %398 = vmatprep.subr.mxu0 0.0
  %399 = vmatpush1.msra.mxu0 0.0
  %400 = vmatprep.subr.mxu0 0.0
  %401 = vmatpush1.msra.mxu0 0.0
  %402 = vmatprep.subr.mxu0 0.0
  %403 = vmatpush1.msra.mxu0 0.0
  %404 = vmatprep.subr.mxu0 0.0
  %405 = vmatpush1.msra.mxu0 0.0
  %406 = vmatprep.subr.mxu0 0.0
  %407 = vmatpush1.msra.mxu0 0.0
  %408 = vmatprep.subr.mxu0 0.0
  %409 = vmatpush1.msra.mxu0 0.0
  %410 = vmatprep.subr.mxu0 0.0
  %411 = vmatpush1.msra.mxu0 0.0
  %412 = vmatprep.subr.mxu0 0.0
  %413 = vmatpush1.msra.mxu0 0.0
  %414 = vmatprep.subr.mxu0 0.0
  %415 = vmatpush1.msra.mxu0 0.0
  %416 = vmatprep.subr.mxu0 0.0
  %417 = vmatpush1.msra.mxu0 0.0
  %418 = vmatprep.subr.mxu0 0.0
  %419 = vmatpush1.msra.mxu0 0.0
  %420 = vmatprep.subr.mxu0 0.0
  %421 = vmatpush1.msra.mxu0 0.0
  %422 = vmatprep.subr.mxu0 0.0
  %423 = vmatpush1.msra.mxu0 0.0
  %424 = vmatprep.subr.mxu0 0.0
  %425 = vmatpush1.msra.mxu0 0.0
  %426 = vmatprep.subr.mxu0 0.0
  %427 = vmatpush1.msra.mxu0 0.0
  %428 = vmatprep.subr.mxu0 0.0
  %429 = vmatpush1.msra.mxu0 0.0
  %430 = vmatprep.subr.mxu0 0.0
  %431 = vmatpush1.msra.mxu0 0.0
  %432 = vmatprep.subr.mxu0 0.0
  %433 = vmatpush1.msra.mxu0 0.0
  %434 = vmatprep.subr.mxu0 0.0
  %435 = vmatpush1.msra.mxu0 0.0
  %436 = vmatprep.subr.mxu0 0.0
  %437 = vmatpush1.msra.mxu0 0.0
  %438 = vmatprep.subr.mxu0 0.0
  %439 = vmatpush1.msra.mxu0 0.0
  %440 = vmatprep.subr.mxu0 0.0
  %441 = vmatpush1.msra.mxu0 0.0
  %442 = vmatprep.subr.mxu0 0.0
  %443 = vmatpush1.msra.mxu0 0.0
  %444 = vmatprep.subr.mxu0 0.0
  %445 = vmatpush1.msra.mxu0 0.0
  %446 = vmatprep.subr.mxu0 0.0
  %447 = vmatpush1.msra.mxu0 0.0
  %448 = vmatprep.mubr.f32.mxu0 0.0
  %449 = vmatmul.mubr.f32.gmra.mrb[0].mxu0 %v131
  %v450 = vpop.f32.mrb[0].mxu0
  %v451 = vadd.f32 %v50, %v450
  %v452 = vpop.f32.mrb[0].mxu0
  %v453 = vadd.f32 %v50, %v452
  %454 = vmatprep.mubr.f32.mxu0 0.0
  %455 = vmatmul.mubr.f32.gmra.mrb[0].mxu0 %v134
  %v456 = vpop.f32.mrb[0].mxu0
  %v457 = vadd.f32 %v55, %v456
  %v458 = vpop.f32.mrb[0].mxu0
  %v459 = vadd.f32 %v55, %v458
  %460 = vmatprep.mubr.f32.mxu0 0.0
  %461 = vmatmul.mubr.f32.gmra.mrb[0].mxu0 %v137
  %v462 = vpop.f32.mrb[0].mxu0
  %v463 = vadd.f32 %v60, %v462
  %v464 = vpop.f32.mrb[0].mxu0
  %v465 = vadd.f32 %v60, %v464
  %466 = vmatprep.mubr.f32.mxu0 0.0
  %467 = vmatmul.mubr.f32.gmra.mrb[0].mxu0 %v140
  %v468 = vpop.f32.mrb[0].mxu0
  %v469 = vadd.f32 %v65, %v468
  %v470 = vpop.f32.mrb[0].mxu0
  %v471 = vadd.f32 %v65, %v470
  %472 = vmatprep.mubr.f32.mxu0 0.0
  %473 = vmatmul.mubr.f32.gmra.mrb[0].mxu0 %v143
  %v474 = vpop.f32.mrb[0].mxu0
  %v475 = vadd.f32 %v70, %v474
  %v476 = vpop.f32.mrb[0].mxu0
  %v477 = vadd.f32 %v70, %v476
  %478 = vmatprep.mubr.f32.mxu0 0.0
  %479 = vmatmul.mubr.f32.gmra.mrb[0].mxu0 %v146
  %v480 = vpop.f32.mrb[0].mxu0
  %v481 = vadd.f32 %v75, %v480
  %v482 = vpop.f32.mrb[0].mxu0
  %v483 = vadd.f32 %v75, %v482
  %484 = vmatprep.mubr.f32.mxu0 0.0
  %485 = vmatmul.mubr.f32.gmra.mrb[0].mxu0 %v149
  %v486 = vpop.f32.mrb[0].mxu0
  %v487 = vadd.f32 %v80, %v486
  %v488 = vpop.f32.mrb[0].mxu0
  %v489 = vadd.f32 %v80, %v488
  %490 = vmatprep.mubr.f32.mxu0 0.0
  %491 = vmatmul.mubr.f32.gmra.mrb[0].mxu0 %v152
  %v492 = vpop.f32.mrb[0].mxu0
  %v493 = vadd.f32 %v85, %v492
  %v494 = vpop.f32.mrb[0].mxu0
  %v495 = vadd.f32 %v85, %v494
  %496 = vmatprep.mubr.f32.mxu0 0.0
  %497 = vmatmul.mubr.f32.gmra.mrb[0].mxu0 %v155
  %v498 = vpop.f32.mrb[0].mxu0
  %v499 = vadd.f32 %v90, %v498
  %v500 = vpop.f32.mrb[0].mxu0
  %v501 = vadd.f32 %v90, %v500
  %502 = vmatprep.mubr.f32.mxu0 0.0
  %503 = vmatmul.mubr.f32.gmra.mrb[0].mxu0 %v158
  %v504 = vpop.f32.mrb[0].mxu0
  %v505 = vadd.f32 %v95, %v504
  %v506 = vpop.f32.mrb[0].mxu0
  %v507 = vadd.f32 %v95, %v506
  %508 = vmatprep.mubr.f32.mxu0 0.0
  %509 = vmatmul.mubr.f32.gmra.mrb[0].mxu0 %v161
  %v510 = vpop.f32.mrb[0].mxu0
  %v511 = vadd.f32 %v100, %v510
  %v512 = vpop.f32.mrb[0].mxu0
  %v513 = vadd.f32 %v100, %v512
  %514 = vmatprep.mubr.f32.mxu0 0.0
  %515 = vmatmul.mubr.f32.gmra.mrb[0].mxu0 %v164
  %v516 = vpop.f32.mrb[0].mxu0
  %v517 = vadd.f32 %v105, %v516
  %v518 = vpop.f32.mrb[0].mxu0
  %v519 = vadd.f32 %v105, %v518
  %520 = vmatprep.mubr.f32.mxu0 0.0
  %521 = vmatmul.mubr.f32.gmra.mrb[0].mxu0 %v167
  %v522 = vpop.f32.mrb[0].mxu0
  %v523 = vadd.f32 %v110, %v522
  %v524 = vpop.f32.mrb[0].mxu0
  %v525 = vadd.f32 %v110, %v524
  %526 = vmatprep.mubr.f32.mxu0 0.0
  %527 = vmatmul.mubr.f32.gmra.mrb[0].mxu0 %v170
  %v528 = vpop.f32.mrb[0].mxu0
  %v529 = vadd.f32 %v115, %v528
  %v530 = vpop.f32.mrb[0].mxu0
  %v531 = vadd.f32 %v115, %v530
  %532 = vmatprep.mubr.f32.mxu0 0.0
  %533 = vmatmul.mubr.f32.gmra.mrb[0].mxu0 %v173
  %v534 = vpop.f32.mrb[0].mxu0
  %v535 = vadd.f32 %v120, %v534
  %v536 = vpop.f32.mrb[0].mxu0
  %v537 = vadd.f32 %v120, %v536
  %538 = vmatprep.mubr.f32.mxu0 0.0
  %539 = vmatmul.mubr.f32.gmra.mrb[0].mxu0 %v176
  %v540 = vpop.f32.mrb[0].mxu0
  %v541 = vadd.f32 %v125, %v540
  %v542 = vpop.f32.mrb[0].mxu0
  %v543 = vadd.f32 %v125, %v542
  %544 = vdwg.mxu0
  %s545 = scalar_lea.vmem %s3, 256
  %546 = vst [vmem:[%s545] sm:$0xff] %v451
  %547 = vst [vmem:[%s545 + $0x8] sm:$0xff] %v453
  %548 = vst [vmem:[%s545 + $0x10] sm:$0xff] %v457
  %549 = vst [vmem:[%s545 + $0x18] sm:$0xff] %v459
  %550 = vst [vmem:[%s545 + $0x20] sm:$0xff] %v463
  %551 = vst [vmem:[%s545 + $0x28] sm:$0xff] %v465
  %552 = vst [vmem:[%s545 + $0x30] sm:$0xff] %v469
  %553 = vst [vmem:[%s545 + $0x38] sm:$0xff] %v471
  %554 = vst [vmem:[%s545 + $0x40] sm:$0xff] %v475
  %555 = vst [vmem:[%s545 + $0x48] sm:$0xff] %v477
  %556 = vst [vmem:[%s545 + $0x50] sm:$0xff] %v481
  %557 = vst [vmem:[%s545 + $0x58] sm:$0xff] %v483
  %558 = vst [vmem:[%s545 + $0x60] sm:$0xff] %v487
  %559 = vst [vmem:[%s545 + $0x68] sm:$0xff] %v489
  %560 = vst [vmem:[%s545 + $0x70] sm:$0xff] %v493
  %561 = vst [vmem:[%s545 + $0x78] sm:$0xff] %v495
  %562 = vst [vmem:[%s545 + $0x80] sm:$0xff] %v499
  %563 = vst [vmem:[%s545 + $0x88] sm:$0xff] %v501
  %564 = vst [vmem:[%s545 + $0x90] sm:$0xff] %v505
  %565 = vst [vmem:[%s545 + $0x98] sm:$0xff] %v507
  %566 = vst [vmem:[%s545 + $0xa0] sm:$0xff] %v511
  %567 = vst [vmem:[%s545 + $0xa8] sm:$0xff] %v513
  %568 = vst [vmem:[%s545 + $0xb0] sm:$0xff] %v517
  %569 = vst [vmem:[%s545 + $0xb8] sm:$0xff] %v519
  %570 = vst [vmem:[%s545 + $0xc0] sm:$0xff] %v523
  %571 = vst [vmem:[%s545 + $0xc8] sm:$0xff] %v525
  %572 = vst [vmem:[%s545 + $0xd0] sm:$0xff] %v529
  %573 = vst [vmem:[%s545 + $0xd8] sm:$0xff] %v531
  %574 = vst [vmem:[%s545 + $0xe0] sm:$0xff] %v535
  %575 = vst [vmem:[%s545 + $0xe8] sm:$0xff] %v537
  %576 = vst [vmem:[%s545 + $0xf0] sm:$0xff] %v541
  %577 = vst [vmem:[%s545 + $0xf8] sm:$0xff] %v543
  // Predicated region
  $region14: #{agent_forward.4} parent=0 // pred_check
    _
  $region15: #{agent_forward.4} parent=0 // pred_check_branch
    %579 = sbr.rel (0) target = $region17
  $region16: #{agent_forward.4} parent=0 // pred_region
    _
  $region17: #{agent_forward.4} parent=0 // pred_fallthru
    _
  // Predicated region
  $region18: #{agent_forward.4} parent=0 // pred_check
    _
  $region19: #{agent_forward.4} parent=0 // pred_check_branch
    %581 = sbr.rel (0) target = $region21
  $region20: #{agent_forward.4} parent=0 // pred_region
    _
  $region21: #{agent_forward.4} parent=0 // pred_fallthru
    _

</llo_original>
